<compile_context>
chip_gen: v5e
topology: v5e:2x2
jax: 0.10.0
libtpu: 0.0.40
codegen_flags: <defaults>
</compile_context>

<pallas_src>
import functools

import jax
import jax.numpy as jnp
import numpy as np
from jax import lax
from jax.experimental import pallas as pl
from jax.experimental.pallas import tpu as pltpu

EPS = 1e-5
K = 3
PAD = 1
LANE = 128
ROW_TILE_CAP = 1024          # upper bound for the M row tile in the tiled path


def _round_up(x, m):
    return ((x + m - 1) // m) * m


@functools.lru_cache(maxsize=1)
def _vmem_limit_bytes():
    """Explicit scoped-VMEM limit derived from the actual chip (64 MiB fallback)."""
    cap = 64 * 1024 * 1024
    try:
        info = pltpu.get_tpu_info()
        cap = int(getattr(info, "vmem_capacity_bytes", cap)) or cap
    except Exception:
        pass
    # ~75% of physical, never above 96 MiB: ~96 MiB on v5e/v6e, ~48 MiB on v7x.
    return min((cap * 3) // 4, 96 * 1024 * 1024)


def _plan(m, layer_shapes, force_tile_rows=None):
    """Pick ONE layout (mode, row tile, padded rows) for the whole encoder block.

    layer_shapes: worst-case (Kp, Cp) of every conv application in the block.
    Sharing a single plan keeps Mp identical across calls, so residual tensors
    produced by one pallas_call feed the next one without any repacking.
    """
    limit = _vmem_limit_bytes()
    budget = int(limit * 0.7)           # headroom for Mosaic-internal scratch

    if force_tile_rows is None:
        # Fully-fused single-step path: conv + BN stats + normalize + ReLU
        # (+ residual) in ONE kernel invocation per convblock.
        mpf = _round_up(max(m, 16), 16)

        def fused_fits(kp, cp):
            # double-buffered bf16 patches/weights/out/residual + one f32 y temp
            return (2 * mpf * kp * 2 + 2 * kp * cp * 2 + 4 * mpf * cp * 2
                    + mpf * cp * 4) <= budget

        if all(fused_fits(kp, cp) for kp, cp in layer_shapes):
            return dict(mode="fused", tm=mpf, mp=mpf, n_half=0, vmem_limit=limit)

    # Tiled two-pass path.
    if force_tile_rows is not None:
        tm = max(8, (int(force_tile_rows) // 8) * 8)
    else:
        def tile_fits(t):
            for kp, cp in layer_shapes:
                p1 = 2 * t * kp * 2 + 2 * kp * cp * 2 + 2 * t * cp * 2
                p2 = 3 * 2 * t * cp * 2           # y + residual + out, bf16, x2 buf
                if max(p1, p2) > budget:
                    return False
            return True

        tm = min(ROW_TILE_CAP, _round_up(m, 8))
        while tm > 8 and not tile_fits(tm):
            tm //= 2
        tm = max(8, (tm // 8) * 8)

    mp = _round_up(m, 2 * tm)            # 2x: rows split across two stat shards
    return dict(mode="tiled", tm=tm, mp=mp, n_half=mp // (2 * tm), vmem_limit=limit)


# ---------------------------------------------------------------------------
# Kernels
# ---------------------------------------------------------------------------
def _bn_relu_from_y(y, gamma, beta, inv_m):
    """Train-mode BN folded into one scale+shift, then ReLU (all f32, in-kernel).

    Zero-padded rows of y are exactly zero and contribute nothing to the sums;
    dividing by the TRUE row count (inv_m) keeps the statistics exact.
    """
    mean = jnp.sum(y, axis=0, keepdims=True) * inv_m
    var = jnp.maximum(jnp.sum(y * y, axis=0, keepdims=True) * inv_m - mean * mean, 0.0)
    scale = gamma * lax.rsqrt(var + EPS)
    shift = beta - mean * scale
    return jnp.maximum(y * scale + shift, 0.0)


def _fused_convblock_kernel(p_ref, w_ref, g_ref, b_ref, o_ref, *, inv_m):
    y = jnp.dot(p_ref[...], w_ref[...], preferred_element_type=jnp.float32)
    o_ref[...] = _bn_relu_from_y(y, g_ref[...], b_ref[...], inv_m).astype(o_ref.dtype)


def _fused_convblock_res_kernel(p_ref, w_ref, g_ref, b_ref, r_ref, o_ref, *, inv_m):
    y = jnp.dot(p_ref[...], w_ref[...], preferred_element_type=jnp.float32)
    out = _bn_relu_from_y(y, g_ref[...], b_ref[...], inv_m) + r_ref[...].astype(jnp.float32)
    o_ref[...] = out.astype(o_ref.dtype)


def _matmul_stats_kernel(p_ref, w_ref, y_ref, sum_ref, ssq_ref):
    """Tiled pass 1: bf16 MXU matmul + per-shard global BN sum / sum-of-squares."""
    y = jnp.dot(p_ref[...], w_ref[...], preferred_element_type=jnp.float32)
    y_ref[...] = y.astype(y_ref.dtype)

    @pl.when(pl.program_id(1) == 0)
    def _init():
        sum_ref[...] = jnp.zeros_like(sum_ref)
        ssq_ref[...] = jnp.zeros_like(ssq_ref)

    sum_ref[...] += jnp.sum(y, axis=0, keepdims=True)
    ssq_ref[...] += jnp.sum(y * y, axis=0, keepdims=True)


def _bn_relu_kernel(y_ref, sc_ref, sh_ref, o_ref):
    y = y_ref[...].astype(jnp.float32)
    o_ref[...] = jnp.maximum(y * sc_ref[...] + sh_ref[...], 0.0).astype(o_ref.dtype)


def _bn_relu_add_kernel(y_ref, sc_ref, sh_ref, r_ref, o_ref):
    y = y_ref[...].astype(jnp.float32)
    out = jnp.maximum(y * sc_ref[...] + sh_ref[...], 0.0) + r_ref[...].astype(jnp.float32)
    o_ref[...] = out.astype(o_ref.dtype)


# ---------------------------------------------------------------------------
# XLA-side glue: NHWC im2col and PyTorch-weight reordering
# ---------------------------------------------------------------------------
def _im2col_nhwc(x, stride):
    """x: (N, H, W, C) -> patches (N*Ho*Wo, K*K*C); column order (kh, kw, cin)."""
    N, H, W, C = x.shape
    Ho = (H + 2 * PAD - K) // stride + 1
    Wo = (W + 2 * PAD - K) // stride + 1
    xp = jnp.pad(x, ((0, 0), (PAD, PAD), (PAD, PAD), (0, 0)))
    taps = []
    for kh in range(K):
        for kw in range(K):
            taps.append(xp[:, kh:kh + (Ho - 1) * stride + 1:stride,
                           kw:kw + (Wo - 1) * stride + 1:stride, :])
    patches = jnp.concatenate(taps, axis=-1)               # (N, Ho, Wo, K*K*C)
    return patches.reshape(N * Ho * Wo, K * K * C), Ho, Wo


def _weight_cols(w):
    """PyTorch (Cout, Cin, 3, 3) -> (K*K*Cin, Cout) matching (kh, kw, cin) columns."""
    cout, cin = w.shape[0], w.shape[1]
    return jnp.transpose(w, (2, 3, 1, 0)).reshape(K * K * cin, cout)


# ---------------------------------------------------------------------------
# One (possibly channel-fused) convblock: conv -> BN(train) -> ReLU [+ residual]
# ---------------------------------------------------------------------------
def fused_conv_bn_relu(patches, groups, *, cp, plan, residual=None, res_cblock=0):
    """patches : (M, Kc) bf16 im2col rows (unpadded).
    groups   : list of (w, bias, gamma, beta); each group is lane-aligned to its
               own cp//len(groups) channel block so downstream consumers can pick
               a group via a pure channel-block BlockSpec index.  `bias` is
               unused: a constant added before train-mode BN is exactly
               cancelled by the mean subtraction.
    residual : optional (Mp, n*cpc) bf16 tensor; its channel block `res_cblock`
               (width cp) is added after the ReLU.
    Returns (Mp, cp) bf16; real data lives in rows [:M] of each group block.
    """
    m, kc = patches.shape
    kp = _round_up(kc, 16)                      # bf16 sublane packing only
    tm, mp, vmem_limit = plan["tm"], plan["mp"], plan["vmem_limit"]
    inv_m = 1.0 / float(m)

    n_groups = len(groups)
    cpc = cp // n_groups
    p_pad = jnp.pad(patches.astype(jnp.bfloat16), ((0, mp - m), (0, kp - kc)))
    w_pad = jnp.zeros((kp, cp), jnp.bfloat16)
    g_pad = jnp.zeros((1, cp), jnp.float32)
    b_pad = jnp.zeros((1, cp), jnp.float32)
    for gi, (w, _bias, gamma, beta) in enumerate(groups):
        wc = _weight_cols(w).astype(jnp.bfloat16)
        co = wc.shape[1]
        w_pad = w_pad.at[:kc, gi * cpc:gi * cpc + co].set(wc)
        g_pad = g_pad.at[:, gi * cpc:gi * cpc + co].set(gamma.astype(jnp.float32)[None])
        b_pad = b_pad.at[:, gi * cpc:gi * cpc + co].set(beta.astype(jnp.float32)[None])

    if plan["mode"] == "fused":
        # ---- everything-in-VMEM path: one pallas_call per convblock ---------
        in_specs = [pl.BlockSpec((mp, kp), lambda i: (0, 0)),
                    pl.BlockSpec((kp, cp), lambda i: (0, 0)),
                    pl.BlockSpec((1, cp), lambda i: (0, 0)),
                    pl.BlockSpec((1, cp), lambda i: (0, 0))]
        args = [p_pad, w_pad, g_pad, b_pad]
        if residual is None:
            kern = functools.partial(_fused_convblock_kernel, inv_m=inv_m)
        else:
            kern = functools.partial(_fused_convblock_res_kernel, inv_m=inv_m)
            in_specs.append(pl.BlockSpec((mp, cp), lambda i, c=res_cblock: (0, c)))
            args.append(residual)
        return pl.pallas_call(
            kern,
            out_shape=jax.ShapeDtypeStruct((mp, cp), jnp.bfloat16),
            grid=(1,),
            in_specs=in_specs,
            out_specs=pl.BlockSpec((mp, cp), lambda i: (0, 0)),
            compiler_params=pltpu.CompilerParams(
                dimension_semantics=("arbitrary",),
                vmem_limit_bytes=vmem_limit),
        )(*args)

    # ---- tiled two-pass path -------------------------------------------------
    n_half = plan["n_half"]
    n_tiles = 2 * n_half

    # pass 1: grid (2, n_half); outer axis "parallel" so both v7x TensorCores run
    # pass 1 — each stat shard owns its own resident (1, cp) accumulator blocks.
    row_in = pl.BlockSpec((tm, kp), lambda c, i, n=n_half: (c * n + i, 0))
    w_spec = pl.BlockSpec((kp, cp), lambda c, i: (0, 0))
    y_spec = pl.BlockSpec((tm, cp), lambda c, i, n=n_half: (c * n + i, 0))
    st_spec = pl.BlockSpec((1, cp), lambda c, i: (c, 0))
    y, psum, pssq = pl.pallas_call(
        _matmul_stats_kernel,
        out_shape=(jax.ShapeDtypeStruct((mp, cp), jnp.bfloat16),
                   jax.ShapeDtypeStruct((2, cp), jnp.float32),
                   jax.ShapeDtypeStruct((2, cp), jnp.float32)),
        grid=(2, n_half),
        in_specs=[row_in, w_spec],
        out_specs=(y_spec, st_spec, st_spec),
        compiler_params=pltpu.CompilerParams(
            dimension_semantics=("parallel", "arbitrary"),
            vmem_limit_bytes=vmem_limit),
    )(p_pad, w_pad)

    # tiny (1, cp) XLA epilogue: reduce the two shards, fold BN into scale/shift.
    mean = jnp.sum(psum, axis=0, keepdims=True) * inv_m
    msq = jnp.sum(pssq, axis=0, keepdims=True) * inv_m
    var = jnp.maximum(msq - mean * mean, 0.0)               # biased, as BN(train)
    scale = g_pad * lax.rsqrt(var + EPS)
    shift = b_pad - mean * scale

    # pass 2: normalize + ReLU (+ residual); fully "parallel" grid, bf16 stores.
    row_y = pl.BlockSpec((tm, cp), lambda i: (i, 0))
    ch = pl.BlockSpec((1, cp), lambda i: (0, 0))
    if residual is None:
        kern, specs, args = _bn_relu_kernel, [row_y, ch, ch], (y, scale, shift)
    else:
        res_spec = pl.BlockSpec((tm, cp), lambda i, c=res_cblock: (i, c))
        kern = _bn_relu_add_kernel
        specs = [row_y, ch, ch, res_spec]
        args = (y, scale, shift, residual)
    return pl.pallas_call(
        kern,
        out_shape=jax.ShapeDtypeStruct((mp, cp), jnp.bfloat16),
        grid=(n_tiles,),
        in_specs=specs,
        out_specs=row_y,
        compiler_params=pltpu.CompilerParams(
            dimension_semantics=("parallel",),
            vmem_limit_bytes=vmem_limit),
    )(*args)


# ---------------------------------------------------------------------------
# EncoderBlock forward (matches the PyTorch module's forward wiring)
# ---------------------------------------------------------------------------
def encoder_block(x_nchw, params, *, force_tile_rows=None):
    """LinkNet EncoderBlock forward with train-mode BatchNorm. NCHW in / NCHW out."""
    N = x_nchw.shape[0]
    cout = params["cb1"][0].shape[0]
    cpc = _round_up(max(cout, LANE), LANE)

    # channels-last once; activations stay bf16 between kernels.
    x = jnp.transpose(x_nchw, (0, 2, 3, 1)).astype(jnp.bfloat16)

    patches1, ho, wo = _im2col_nhwc(x, stride=2)
    m = N * ho * wo
    kp1 = _round_up(patches1.shape[1], 16)
    kp2 = _round_up(K * K * cout, 16)
    plan = _plan(m, ((kp1, 2 * cpc), (kp2, cpc)), force_tile_rows)

    # convblock1 and residue share input & stride: one im2col, one fused matmul;
    # each group is lane-aligned to its own cpc-wide channel block.
    out_a = fused_conv_bn_relu(patches1, [params["cb1"], params["residue"]],
                               cp=2 * cpc, plan=plan)
    c1 = out_a[:m, :cout].reshape(N, ho, wo, cout)

    # input_2 = residue(input) + convblock2(c1); the residue is channel block 1 of
    # out_a and is consumed directly by the kernel's BlockSpec (no XLA repack).
    p2, _, _ = _im2col_nhwc(c1, stride=1)
    input2_flat = fused_conv_bn_relu(p2, [params["cb2"]], cp=cpc, plan=plan,
                                     residual=out_a, res_cblock=1)
    input2 = input2_flat[:m, :cout].reshape(N, ho, wo, cout)

    # x = convblock3(input_2)
    p3, _, _ = _im2col_nhwc(input2, stride=1)
    c3_flat = fused_conv_bn_relu(p3, [params["cb3"]], cp=cpc, plan=plan)
    c3 = c3_flat[:m, :cout].reshape(N, ho, wo, cout)

    # out = convblock4(x) + input_2  (input_2 already lives in flat (Mp, cpc) form)
    p4, _, _ = _im2col_nhwc(c3, stride=1)
    out_flat = fused_conv_bn_relu(p4, [params["cb4"]], cp=cpc, plan=plan,
                                  residual=input2_flat, res_cblock=0)
    out = out_flat[:m, :cout].reshape(N, ho, wo, cout).astype(jnp.float32)
    return jnp.transpose(out, (0, 3, 1, 2))                 # back to NCHW, once


# ---------------------------------------------------------------------------
# Pure-JAX f32 reference (sanity check of the fused kernels)
# ---------------------------------------------------------------------------
def _ref_convblock(x_nhwc, p, stride):
    w, b, gamma, beta = p
    y = lax.conv_general_dilated(
        x_nhwc, jnp.transpose(w, (2, 3, 1, 0)), window_strides=(stride, stride),
        padding=((PAD, PAD), (PAD, PAD)),
        dimension_numbers=("NHWC", "HWIO", "NHWC"))
    y = y + b
    mean = jnp.mean(y, axis=(0, 1, 2))
    var = jnp.mean(jnp.square(y - mean), axis=(0, 1, 2))
    y = (y - mean) * lax.rsqrt(var + EPS) * gamma + beta
    return jnp.maximum(y, 0.0)


def _ref_encoder_block(x_nchw, params):
    x = jnp.transpose(x_nchw, (0, 2, 3, 1))
    c1 = _ref_convblock(x, params["cb1"], 2)
    c2 = _ref_convblock(c1, params["cb2"], 1)
    input_2 = _ref_convblock(x, params["residue"], 2) + c2
    c3 = _ref_convblock(input_2, params["cb3"], 1)
    c4 = _ref_convblock(c3, params["cb4"], 1)
    return jnp.transpose(c4 + input_2, (0, 3, 1, 2))


# ---------------------------------------------------------------------------
# Deterministic parameter init (PyTorch-default-like)
# ---------------------------------------------------------------------------
def _init_convblock(key, cin, cout):
    k1, k2 = jax.random.split(key)
    fan_in = cin * K * K
    bound = 1.0 / np.sqrt(fan_in)
    w = jax.random.uniform(k1, (cout, cin, K, K), jnp.float32, -bound, bound)
    b = jax.random.uniform(k2, (cout,), jnp.float32, -bound, bound)
    gamma = jnp.ones((cout,), jnp.float32)     # BatchNorm2d default init
    beta = jnp.zeros((cout,), jnp.float32)
    return (w, b, gamma, beta)


def init_encoder_block(key, input_channel, output_channel):
    keys = jax.random.split(key, 5)
    return {
        "cb1": _init_convblock(keys[0], input_channel, output_channel),
        "cb2": _init_convblock(keys[1], output_channel, output_channel),
        "cb3": _init_convblock(keys[2], output_channel, output_channel),
        "cb4": _init_convblock(keys[3], output_channel, output_channel),
        "residue": _init_convblock(keys[4], input_channel, output_channel),
    }


if __name__ == "__main__":
    key = jax.random.PRNGKey(0)
    k_params, k_x1, k_x2 = jax.random.split(key, 3)

    input_channel = 3
    output_channel = 8
    params = init_encoder_block(k_params, input_channel, output_channel)

    fwd = jax.jit(encoder_block, static_argnames=("force_tile_rows",))
    ref = jax.jit(_ref_encoder_block)

    # Primary config (small, PyTorch NCHW): exercises the fully-fused path
    # (one pallas_call per convblock, everything resident in VMEM).
    x1 = jax.random.normal(k_x1, (2, input_channel, 16, 16), dtype=jnp.float32)
    out1 = jax.block_until_ready(fwd(x1, params))
    assert out1.shape == (2, output_channel, 8, 8), out1.shape
    assert bool(jnp.all(jnp.isfinite(out1)))
    err1 = float(jnp.max(jnp.abs(out1 - jax.block_until_ready(ref(x1, params)))))
    assert err1 < 0.3, f"fused-path max abs error vs reference: {err1}"

    # Secondary config: force the tiled two-pass (megacore-style 2-D grid) path
    # so the large-M code path is also compiled and verified.
    x2 = jax.random.normal(k_x2, (2, input_channel, 32, 32), dtype=jnp.float32)
    out2 = jax.block_until_ready(fwd(x2, params, force_tile_rows=128))
    assert out2.shape == (2, output_channel, 16, 16), out2.shape
    assert bool(jnp.all(jnp.isfinite(out2)))
    err2 = float(jnp.max(jnp.abs(out2 - jax.block_until_ready(ref(x2, params)))))
    assert err2 < 0.3, f"tiled-path max abs error vs reference: {err2}"

    print("KERNEL_OK")
</pallas_src>

<mosaic_0001>
module attributes {stable_mosaic.version = 11 : i64} {
  func.func @_fused_convblock_kernel(%arg0: i32, %arg1: memref<128x32xbf16, #tpu.memory_space<vmem>>, %arg2: memref<32x256xbf16, #tpu.memory_space<vmem>>, %arg3: memref<1x256xf32, #tpu.memory_space<vmem>>, %arg4: memref<1x256xf32, #tpu.memory_space<vmem>>, %arg5: memref<128x256xbf16, #tpu.memory_space<vmem>>) attributes {dimension_semantics = [#tpu.dimension_semantics<arbitrary>], iteration_bounds = array<i64: 1>, scalar_prefetch = 0 : i64, scratch_operands = 0 : i64, tpu.core_type = #tpu.core_type<tc>, window_params = [{pipeline_mode = #tpu.pipeline_mode<synchronous>, transform_indices = @transform_0, window_bounds = array<i64: 128, 32>}, {pipeline_mode = #tpu.pipeline_mode<synchronous>, transform_indices = @transform_1, window_bounds = array<i64: 32, 256>}, {pipeline_mode = #tpu.pipeline_mode<synchronous>, transform_indices = @transform_2, window_bounds = array<i64: 1, 256>}, {pipeline_mode = #tpu.pipeline_mode<synchronous>, transform_indices = @transform_3, window_bounds = array<i64: 1, 256>}, {pipeline_mode = #tpu.pipeline_mode<synchronous>, transform_indices = @transform_4, window_bounds = array<i64: 128, 256>}]} {
    %c0 = arith.constant 0 : index
    %c0_0 = arith.constant 0 : index
    %0 = vector.load %arg1[%c0, %c0_0] : memref<128x32xbf16, #tpu.memory_space<vmem>>, vector<128x32xbf16>
    %c0_1 = arith.constant 0 : index
    %c0_2 = arith.constant 0 : index
    %1 = vector.load %arg2[%c0_1, %c0_2] : memref<32x256xbf16, #tpu.memory_space<vmem>>, vector<32x256xbf16>
    %cst = arith.constant dense<0.000000e+00> : vector<128x256xf32>
    %2 = tpu.matmul %0, %1, %cst {dimension_numbers = #tpu.dot_dimension_numbers<[1], [0], [0], [1], [0, 0, 1, 1], [], []>} : vector<128x32xbf16>, vector<32x256xbf16>, vector<128x256xf32> -> vector<128x256xf32>
    %c0_3 = arith.constant 0 : index
    %c0_4 = arith.constant 0 : index
    %3 = vector.load %arg3[%c0_3, %c0_4] : memref<1x256xf32, #tpu.memory_space<vmem>>, vector<1x256xf32>
    %c0_5 = arith.constant 0 : index
    %c0_6 = arith.constant 0 : index
    %4 = vector.load %arg4[%c0_5, %c0_6] : memref<1x256xf32, #tpu.memory_space<vmem>>, vector<1x256xf32>
    %cst_7 = arith.constant dense<0.000000e+00> : vector<256xf32>
    %5 = vector.multi_reduction <add>, %2, %cst_7 [0] : vector<128x256xf32> to vector<256xf32>
    %6 = vector.shape_cast %5 : vector<256xf32> to vector<1x256xf32>
    %cst_8 = arith.constant 7.812500e-03 : f32
    %7 = vector.broadcast %cst_8 : f32 to vector<1x256xf32>
    %8 = arith.mulf %6, %7 : vector<1x256xf32>
    %9 = arith.mulf %2, %2 : vector<128x256xf32>
    %cst_9 = arith.constant dense<0.000000e+00> : vector<256xf32>
    %10 = vector.multi_reduction <add>, %9, %cst_9 [0] : vector<128x256xf32> to vector<256xf32>
    %11 = vector.shape_cast %10 : vector<256xf32> to vector<1x256xf32>
    %cst_10 = arith.constant 7.812500e-03 : f32
    %12 = vector.broadcast %cst_10 : f32 to vector<1x256xf32>
    %13 = arith.mulf %11, %12 : vector<1x256xf32>
    %14 = arith.mulf %8, %8 : vector<1x256xf32>
    %15 = arith.subf %13, %14 : vector<1x256xf32>
    %cst_11 = arith.constant 0.000000e+00 : f32
    %16 = vector.broadcast %cst_11 : f32 to vector<1x256xf32>
    %17 = arith.maximumf %15, %16 : vector<1x256xf32>
    %cst_12 = arith.constant 9.99999974E-6 : f32
    %18 = vector.broadcast %cst_12 : f32 to vector<1x256xf32>
    %19 = arith.addf %17, %18 : vector<1x256xf32>
    %20 = math.rsqrt %19 : vector<1x256xf32>
    %21 = arith.mulf %3, %20 : vector<1x256xf32>
    %22 = arith.mulf %8, %21 : vector<1x256xf32>
    %23 = arith.subf %4, %22 : vector<1x256xf32>
    %24 = vector.broadcast %21 : vector<1x256xf32> to vector<128x256xf32>
    %25 = arith.mulf %2, %24 : vector<128x256xf32>
    %26 = vector.broadcast %23 : vector<1x256xf32> to vector<128x256xf32>
    %27 = arith.addf %25, %26 : vector<128x256xf32>
    %cst_13 = arith.constant 0.000000e+00 : f32
    %28 = vector.broadcast %cst_13 : f32 to vector<128x256xf32>
    %29 = arith.maximumf %27, %28 : vector<128x256xf32>
    %30 = arith.truncf %29 : vector<128x256xf32> to vector<128x256xbf16>
    %c0_14 = arith.constant 0 : index
    %c0_15 = arith.constant 0 : index
    %31 = vector.load %arg5[%c0_14, %c0_15] : memref<128x256xbf16, #tpu.memory_space<vmem>>, vector<128x256xbf16>
    tpu.vector_store %arg5[%c0_14, %c0_15], %30 {strides = array<i32>} : memref<128x256xbf16, #tpu.memory_space<vmem>>, vector<128x256xbf16>,
    return
  }
  func.func @transform_0(%arg0: i32) -> (i32, i32) {
    %c0_i32 = arith.constant 0 : i32
    %c0_i32_0 = arith.constant 0 : i32
    %c0_i32_1 = arith.constant 0 : i32
    return %c0_i32, %c0_i32_0 : i32, i32
  }
  func.func @transform_1(%arg0: i32) -> (i32, i32) {
    %c0_i32 = arith.constant 0 : i32
    %c0_i32_0 = arith.constant 0 : i32
    %c0_i32_1 = arith.constant 0 : i32
    return %c0_i32, %c0_i32_0 : i32, i32
  }
  func.func @transform_2(%arg0: i32) -> (i32, i32) {
    %c0_i32 = arith.constant 0 : i32
    %c0_i32_0 = arith.constant 0 : i32
    %c0_i32_1 = arith.constant 0 : i32
    return %c0_i32, %c0_i32_0 : i32, i32
  }
  func.func @transform_3(%arg0: i32) -> (i32, i32) {
    %c0_i32 = arith.constant 0 : i32
    %c0_i32_0 = arith.constant 0 : i32
    %c0_i32_1 = arith.constant 0 : i32
    return %c0_i32, %c0_i32_0 : i32, i32
  }
  func.func @transform_4(%arg0: i32) -> (i32, i32) {
    %c0_i32 = arith.constant 0 : i32
    %c0_i32_0 = arith.constant 0 : i32
    %c0_i32_1 = arith.constant 0 : i32
    return %c0_i32, %c0_i32_0 : i32, i32
  }
}

module attributes {stable_mosaic.version = 11 : i64} {
  func.func @_fused_convblock_kernel(%arg0: i32, %arg1: memref<128x80xbf16, #tpu.memory_space<vmem>>, %arg2: memref<80x128xbf16, #tpu.memory_space<vmem>>, %arg3: memref<1x128xf32, #tpu.memory_space<vmem>>, %arg4: memref<1x128xf32, #tpu.memory_space<vmem>>, %arg5: memref<128x128xbf16, #tpu.memory_space<vmem>>) attributes {dimension_semantics = [#tpu.dimension_semantics<arbitrary>], iteration_bounds = array<i64: 1>, scalar_prefetch = 0 : i64, scratch_operands = 0 : i64, tpu.core_type = #tpu.core_type<tc>, window_params = [{pipeline_mode = #tpu.pipeline_mode<synchronous>, transform_indices = @transform_0, window_bounds = array<i64: 128, 80>}, {pipeline_mode = #tpu.pipeline_mode<synchronous>, transform_indices = @transform_1, window_bounds = array<i64: 80, 128>}, {pipeline_mode = #tpu.pipeline_mode<synchronous>, transform_indices = @transform_2, window_bounds = array<i64: 1, 128>}, {pipeline_mode = #tpu.pipeline_mode<synchronous>, transform_indices = @transform_3, window_bounds = array<i64: 1, 128>}, {pipeline_mode = #tpu.pipeline_mode<synchronous>, transform_indices = @transform_4, window_bounds = array<i64: 128, 128>}]} {
    %c0 = arith.constant 0 : index
    %c0_0 = arith.constant 0 : index
    %0 = vector.load %arg1[%c0, %c0_0] : memref<128x80xbf16, #tpu.memory_space<vmem>>, vector<128x80xbf16>
    %c0_1 = arith.constant 0 : index
    %c0_2 = arith.constant 0 : index
    %1 = vector.load %arg2[%c0_1, %c0_2] : memref<80x128xbf16, #tpu.memory_space<vmem>>, vector<80x128xbf16>
    %cst = arith.constant dense<0.000000e+00> : vector<128x128xf32>
    %2 = tpu.matmul %0, %1, %cst {dimension_numbers = #tpu.dot_dimension_numbers<[1], [0], [0], [1], [0, 0, 1, 1], [], []>} : vector<128x80xbf16>, vector<80x128xbf16>, vector<128x128xf32> -> vector<128x128xf32>
    %c0_3 = arith.constant 0 : index
    %c0_4 = arith.constant 0 : index
    %3 = vector.load %arg3[%c0_3, %c0_4] : memref<1x128xf32, #tpu.memory_space<vmem>>, vector<1x128xf32>
    %c0_5 = arith.constant 0 : index
    %c0_6 = arith.constant 0 : index
    %4 = vector.load %arg4[%c0_5, %c0_6] : memref<1x128xf32, #tpu.memory_space<vmem>>, vector<1x128xf32>
    %cst_7 = arith.constant dense<0.000000e+00> : vector<128xf32>
    %5 = vector.multi_reduction <add>, %2, %cst_7 [0] : vector<128x128xf32> to vector<128xf32>
    %6 = vector.shape_cast %5 : vector<128xf32> to vector<1x128xf32>
    %cst_8 = arith.constant 7.812500e-03 : f32
    %7 = vector.broadcast %cst_8 : f32 to vector<1x128xf32>
    %8 = arith.mulf %6, %7 : vector<1x128xf32>
    %9 = arith.mulf %2, %2 : vector<128x128xf32>
    %cst_9 = arith.constant dense<0.000000e+00> : vector<128xf32>
    %10 = vector.multi_reduction <add>, %9, %cst_9 [0] : vector<128x128xf32> to vector<128xf32>
    %11 = vector.shape_cast %10 : vector<128xf32> to vector<1x128xf32>
    %cst_10 = arith.constant 7.812500e-03 : f32
    %12 = vector.broadcast %cst_10 : f32 to vector<1x128xf32>
    %13 = arith.mulf %11, %12 : vector<1x128xf32>
    %14 = arith.mulf %8, %8 : vector<1x128xf32>
    %15 = arith.subf %13, %14 : vector<1x128xf32>
    %cst_11 = arith.constant 0.000000e+00 : f32
    %16 = vector.broadcast %cst_11 : f32 to vector<1x128xf32>
    %17 = arith.maximumf %15, %16 : vector<1x128xf32>
    %cst_12 = arith.constant 9.99999974E-6 : f32
    %18 = vector.broadcast %cst_12 : f32 to vector<1x128xf32>
    %19 = arith.addf %17, %18 : vector<1x128xf32>
    %20 = math.rsqrt %19 : vector<1x128xf32>
    %21 = arith.mulf %3, %20 : vector<1x128xf32>
    %22 = arith.mulf %8, %21 : vector<1x128xf32>
    %23 = arith.subf %4, %22 : vector<1x128xf32>
    %24 = vector.broadcast %21 : vector<1x128xf32> to vector<128x128xf32>
    %25 = arith.mulf %2, %24 : vector<128x128xf32>
    %26 = vector.broadcast %23 : vector<1x128xf32> to vector<128x128xf32>
    %27 = arith.addf %25, %26 : vector<128x128xf32>
    %cst_13 = arith.constant 0.000000e+00 : f32
    %28 = vector.broadcast %cst_13 : f32 to vector<128x128xf32>
    %29 = arith.maximumf %27, %28 : vector<128x128xf32>
    %30 = arith.truncf %29 : vector<128x128xf32> to vector<128x128xbf16>
    %c0_14 = arith.constant 0 : index
    %c0_15 = arith.constant 0 : index
    %31 = vector.load %arg5[%c0_14, %c0_15] : memref<128x128xbf16, #tpu.memory_space<vmem>>, vector<128x128xbf16>
    tpu.vector_store %arg5[%c0_14, %c0_15], %30 {strides = array<i32>} : memref<128x128xbf16, #tpu.memory_space<vmem>>, vector<128x128xbf16>,
    return
  }
  func.func @transform_0(%arg0: i32) -> (i32, i32) {
    %c0_i32 = arith.constant 0 : i32
    %c0_i32_0 = arith.constant 0 : i32
    %c0_i32_1 = arith.constant 0 : i32
    return %c0_i32, %c0_i32_0 : i32, i32
  }
  func.func @transform_1(%arg0: i32) -> (i32, i32) {
    %c0_i32 = arith.constant 0 : i32
    %c0_i32_0 = arith.constant 0 : i32
    %c0_i32_1 = arith.constant 0 : i32
    return %c0_i32, %c0_i32_0 : i32, i32
  }
  func.func @transform_2(%arg0: i32) -> (i32, i32) {
    %c0_i32 = arith.constant 0 : i32
    %c0_i32_0 = arith.constant 0 : i32
    %c0_i32_1 = arith.constant 0 : i32
    return %c0_i32, %c0_i32_0 : i32, i32
  }
  func.func @transform_3(%arg0: i32) -> (i32, i32) {
    %c0_i32 = arith.constant 0 : i32
    %c0_i32_0 = arith.constant 0 : i32
    %c0_i32_1 = arith.constant 0 : i32
    return %c0_i32, %c0_i32_0 : i32, i32
  }
  func.func @transform_4(%arg0: i32) -> (i32, i32) {
    %c0_i32 = arith.constant 0 : i32
    %c0_i32_0 = arith.constant 0 : i32
    %c0_i32_1 = arith.constant 0 : i32
    return %c0_i32, %c0_i32_0 : i32, i32
  }
}

module attributes {stable_mosaic.version = 11 : i64} {
  func.func @_fused_convblock_res_kernel(%arg0: i32, %arg1: memref<128x80xbf16, #tpu.memory_space<vmem>>, %arg2: memref<80x128xbf16, #tpu.memory_space<vmem>>, %arg3: memref<1x128xf32, #tpu.memory_space<vmem>>, %arg4: memref<1x128xf32, #tpu.memory_space<vmem>>, %arg5: memref<128x128xbf16, #tpu.memory_space<vmem>>, %arg6: memref<128x128xbf16, #tpu.memory_space<vmem>>) attributes {dimension_semantics = [#tpu.dimension_semantics<arbitrary>], iteration_bounds = array<i64: 1>, scalar_prefetch = 0 : i64, scratch_operands = 0 : i64, tpu.core_type = #tpu.core_type<tc>, window_params = [{pipeline_mode = #tpu.pipeline_mode<synchronous>, transform_indices = @transform_0, window_bounds = array<i64: 128, 80>}, {pipeline_mode = #tpu.pipeline_mode<synchronous>, transform_indices = @transform_1, window_bounds = array<i64: 80, 128>}, {pipeline_mode = #tpu.pipeline_mode<synchronous>, transform_indices = @transform_2, window_bounds = array<i64: 1, 128>}, {pipeline_mode = #tpu.pipeline_mode<synchronous>, transform_indices = @transform_3, window_bounds = array<i64: 1, 128>}, {transform_indices = @transform_4, window_bounds = array<i64: 128, 128>}, {pipeline_mode = #tpu.pipeline_mode<synchronous>, transform_indices = @transform_5, window_bounds = array<i64: 128, 128>}]} {
    %c0 = arith.constant 0 : index
    %c0_0 = arith.constant 0 : index
    %0 = vector.load %arg1[%c0, %c0_0] : memref<128x80xbf16, #tpu.memory_space<vmem>>, vector<128x80xbf16>
    %c0_1 = arith.constant 0 : index
    %c0_2 = arith.constant 0 : index
    %1 = vector.load %arg2[%c0_1, %c0_2] : memref<80x128xbf16, #tpu.memory_space<vmem>>, vector<80x128xbf16>
    %cst = arith.constant dense<0.000000e+00> : vector<128x128xf32>
    %2 = tpu.matmul %0, %1, %cst {dimension_numbers = #tpu.dot_dimension_numbers<[1], [0], [0], [1], [0, 0, 1, 1], [], []>} : vector<128x80xbf16>, vector<80x128xbf16>, vector<128x128xf32> -> vector<128x128xf32>
    %c0_3 = arith.constant 0 : index
    %c0_4 = arith.constant 0 : index
    %3 = vector.load %arg3[%c0_3, %c0_4] : memref<1x128xf32, #tpu.memory_space<vmem>>, vector<1x128xf32>
    %c0_5 = arith.constant 0 : index
    %c0_6 = arith.constant 0 : index
    %4 = vector.load %arg4[%c0_5, %c0_6] : memref<1x128xf32, #tpu.memory_space<vmem>>, vector<1x128xf32>
    %cst_7 = arith.constant dense<0.000000e+00> : vector<128xf32>
    %5 = vector.multi_reduction <add>, %2, %cst_7 [0] : vector<128x128xf32> to vector<128xf32>
    %6 = vector.shape_cast %5 : vector<128xf32> to vector<1x128xf32>
    %cst_8 = arith.constant 7.812500e-03 : f32
    %7 = vector.broadcast %cst_8 : f32 to vector<1x128xf32>
    %8 = arith.mulf %6, %7 : vector<1x128xf32>
    %9 = arith.mulf %2, %2 : vector<128x128xf32>
    %cst_9 = arith.constant dense<0.000000e+00> : vector<128xf32>
    %10 = vector.multi_reduction <add>, %9, %cst_9 [0] : vector<128x128xf32> to vector<128xf32>
    %11 = vector.shape_cast %10 : vector<128xf32> to vector<1x128xf32>
    %cst_10 = arith.constant 7.812500e-03 : f32
    %12 = vector.broadcast %cst_10 : f32 to vector<1x128xf32>
    %13 = arith.mulf %11, %12 : vector<1x128xf32>
    %14 = arith.mulf %8, %8 : vector<1x128xf32>
    %15 = arith.subf %13, %14 : vector<1x128xf32>
    %cst_11 = arith.constant 0.000000e+00 : f32
    %16 = vector.broadcast %cst_11 : f32 to vector<1x128xf32>
    %17 = arith.maximumf %15, %16 : vector<1x128xf32>
    %cst_12 = arith.constant 9.99999974E-6 : f32
    %18 = vector.broadcast %cst_12 : f32 to vector<1x128xf32>
    %19 = arith.addf %17, %18 : vector<1x128xf32>
    %20 = math.rsqrt %19 : vector<1x128xf32>
    %21 = arith.mulf %3, %20 : vector<1x128xf32>
    %22 = arith.mulf %8, %21 : vector<1x128xf32>
    %23 = arith.subf %4, %22 : vector<1x128xf32>
    %24 = vector.broadcast %21 : vector<1x128xf32> to vector<128x128xf32>
    %25 = arith.mulf %2, %24 : vector<128x128xf32>
    %26 = vector.broadcast %23 : vector<1x128xf32> to vector<128x128xf32>
    %27 = arith.addf %25, %26 : vector<128x128xf32>
    %cst_13 = arith.constant 0.000000e+00 : f32
    %28 = vector.broadcast %cst_13 : f32 to vector<128x128xf32>
    %29 = arith.maximumf %27, %28 : vector<128x128xf32>
    %c0_14 = arith.constant 0 : index
    %c0_15 = arith.constant 0 : index
    %30 = vector.load %arg5[%c0_14, %c0_15] : memref<128x128xbf16, #tpu.memory_space<vmem>>, vector<128x128xbf16>
    %31 = arith.extf %30 : vector<128x128xbf16> to vector<128x128xf32>
    %32 = arith.addf %29, %31 : vector<128x128xf32>
    %33 = arith.truncf %32 : vector<128x128xf32> to vector<128x128xbf16>
    %c0_16 = arith.constant 0 : index
    %c0_17 = arith.constant 0 : index
    %34 = vector.load %arg6[%c0_16, %c0_17] : memref<128x128xbf16, #tpu.memory_space<vmem>>, vector<128x128xbf16>
    tpu.vector_store %arg6[%c0_16, %c0_17], %33 {strides = array<i32>} : memref<128x128xbf16, #tpu.memory_space<vmem>>, vector<128x128xbf16>,
    return
  }
  func.func @transform_0(%arg0: i32) -> (i32, i32) {
    %c0_i32 = arith.constant 0 : i32
    %c0_i32_0 = arith.constant 0 : i32
    %c0_i32_1 = arith.constant 0 : i32
    return %c0_i32, %c0_i32_0 : i32, i32
  }
  func.func @transform_1(%arg0: i32) -> (i32, i32) {
    %c0_i32 = arith.constant 0 : i32
    %c0_i32_0 = arith.constant 0 : i32
    %c0_i32_1 = arith.constant 0 : i32
    return %c0_i32, %c0_i32_0 : i32, i32
  }
  func.func @transform_2(%arg0: i32) -> (i32, i32) {
    %c0_i32 = arith.constant 0 : i32
    %c0_i32_0 = arith.constant 0 : i32
    %c0_i32_1 = arith.constant 0 : i32
    return %c0_i32, %c0_i32_0 : i32, i32
  }
  func.func @transform_3(%arg0: i32) -> (i32, i32) {
    %c0_i32 = arith.constant 0 : i32
    %c0_i32_0 = arith.constant 0 : i32
    %c0_i32_1 = arith.constant 0 : i32
    return %c0_i32, %c0_i32_0 : i32, i32
  }
  func.func @transform_4(%arg0: i32) -> (i32, i32) {
    %c0_i32 = arith.constant 0 : i32
    %c1_i32 = arith.constant 1 : i32
    %c0_i32_0 = arith.constant 0 : i32
    return %c0_i32, %c1_i32 : i32, i32
  }
  func.func @transform_5(%arg0: i32) -> (i32, i32) {
    %c0_i32 = arith.constant 0 : i32
    %c0_i32_0 = arith.constant 0 : i32
    %c0_i32_1 = arith.constant 0 : i32
    return %c0_i32, %c0_i32_0 : i32, i32
  }
}

module attributes {stable_mosaic.version = 11 : i64} {
  func.func @_fused_convblock_res_kernel(%arg0: i32, %arg1: memref<128x80xbf16, #tpu.memory_space<vmem>>, %arg2: memref<80x128xbf16, #tpu.memory_space<vmem>>, %arg3: memref<1x128xf32, #tpu.memory_space<vmem>>, %arg4: memref<1x128xf32, #tpu.memory_space<vmem>>, %arg5: memref<128x128xbf16, #tpu.memory_space<vmem>>, %arg6: memref<128x128xbf16, #tpu.memory_space<vmem>>) attributes {dimension_semantics = [#tpu.dimension_semantics<arbitrary>], iteration_bounds = array<i64: 1>, scalar_prefetch = 0 : i64, scratch_operands = 0 : i64, tpu.core_type = #tpu.core_type<tc>, window_params = [{pipeline_mode = #tpu.pipeline_mode<synchronous>, transform_indices = @transform_0, window_bounds = array<i64: 128, 80>}, {pipeline_mode = #tpu.pipeline_mode<synchronous>, transform_indices = @transform_1, window_bounds = array<i64: 80, 128>}, {pipeline_mode = #tpu.pipeline_mode<synchronous>, transform_indices = @transform_2, window_bounds = array<i64: 1, 128>}, {pipeline_mode = #tpu.pipeline_mode<synchronous>, transform_indices = @transform_3, window_bounds = array<i64: 1, 128>}, {pipeline_mode = #tpu.pipeline_mode<synchronous>, transform_indices = @transform_4, window_bounds = array<i64: 128, 128>}, {pipeline_mode = #tpu.pipeline_mode<synchronous>, transform_indices = @transform_5, window_bounds = array<i64: 128, 128>}]} {
    %c0 = arith.constant 0 : index
    %c0_0 = arith.constant 0 : index
    %0 = vector.load %arg1[%c0, %c0_0] : memref<128x80xbf16, #tpu.memory_space<vmem>>, vector<128x80xbf16>
    %c0_1 = arith.constant 0 : index
    %c0_2 = arith.constant 0 : index
    %1 = vector.load %arg2[%c0_1, %c0_2] : memref<80x128xbf16, #tpu.memory_space<vmem>>, vector<80x128xbf16>
    %cst = arith.constant dense<0.000000e+00> : vector<128x128xf32>
    %2 = tpu.matmul %0, %1, %cst {dimension_numbers = #tpu.dot_dimension_numbers<[1], [0], [0], [1], [0, 0, 1, 1], [], []>} : vector<128x80xbf16>, vector<80x128xbf16>, vector<128x128xf32> -> vector<128x128xf32>
    %c0_3 = arith.constant 0 : index
    %c0_4 = arith.constant 0 : index
    %3 = vector.load %arg3[%c0_3, %c0_4] : memref<1x128xf32, #tpu.memory_space<vmem>>, vector<1x128xf32>
    %c0_5 = arith.constant 0 : index
    %c0_6 = arith.constant 0 : index
    %4 = vector.load %arg4[%c0_5, %c0_6] : memref<1x128xf32, #tpu.memory_space<vmem>>, vector<1x128xf32>
    %cst_7 = arith.constant dense<0.000000e+00> : vector<128xf32>
    %5 = vector.multi_reduction <add>, %2, %cst_7 [0] : vector<128x128xf32> to vector<128xf32>
    %6 = vector.shape_cast %5 : vector<128xf32> to vector<1x128xf32>
    %cst_8 = arith.constant 7.812500e-03 : f32
    %7 = vector.broadcast %cst_8 : f32 to vector<1x128xf32>
    %8 = arith.mulf %6, %7 : vector<1x128xf32>
    %9 = arith.mulf %2, %2 : vector<128x128xf32>
    %cst_9 = arith.constant dense<0.000000e+00> : vector<128xf32>
    %10 = vector.multi_reduction <add>, %9, %cst_9 [0] : vector<128x128xf32> to vector<128xf32>
    %11 = vector.shape_cast %10 : vector<128xf32> to vector<1x128xf32>
    %cst_10 = arith.constant 7.812500e-03 : f32
    %12 = vector.broadcast %cst_10 : f32 to vector<1x128xf32>
    %13 = arith.mulf %11, %12 : vector<1x128xf32>
    %14 = arith.mulf %8, %8 : vector<1x128xf32>
    %15 = arith.subf %13, %14 : vector<1x128xf32>
    %cst_11 = arith.constant 0.000000e+00 : f32
    %16 = vector.broadcast %cst_11 : f32 to vector<1x128xf32>
    %17 = arith.maximumf %15, %16 : vector<1x128xf32>
    %cst_12 = arith.constant 9.99999974E-6 : f32
    %18 = vector.broadcast %cst_12 : f32 to vector<1x128xf32>
    %19 = arith.addf %17, %18 : vector<1x128xf32>
    %20 = math.rsqrt %19 : vector<1x128xf32>
    %21 = arith.mulf %3, %20 : vector<1x128xf32>
    %22 = arith.mulf %8, %21 : vector<1x128xf32>
    %23 = arith.subf %4, %22 : vector<1x128xf32>
    %24 = vector.broadcast %21 : vector<1x128xf32> to vector<128x128xf32>
    %25 = arith.mulf %2, %24 : vector<128x128xf32>
    %26 = vector.broadcast %23 : vector<1x128xf32> to vector<128x128xf32>
    %27 = arith.addf %25, %26 : vector<128x128xf32>
    %cst_13 = arith.constant 0.000000e+00 : f32
    %28 = vector.broadcast %cst_13 : f32 to vector<128x128xf32>
    %29 = arith.maximumf %27, %28 : vector<128x128xf32>
    %c0_14 = arith.constant 0 : index
    %c0_15 = arith.constant 0 : index
    %30 = vector.load %arg5[%c0_14, %c0_15] : memref<128x128xbf16, #tpu.memory_space<vmem>>, vector<128x128xbf16>
    %31 = arith.extf %30 : vector<128x128xbf16> to vector<128x128xf32>
    %32 = arith.addf %29, %31 : vector<128x128xf32>
    %33 = arith.truncf %32 : vector<128x128xf32> to vector<128x128xbf16>
    %c0_16 = arith.constant 0 : index
    %c0_17 = arith.constant 0 : index
    %34 = vector.load %arg6[%c0_16, %c0_17] : memref<128x128xbf16, #tpu.memory_space<vmem>>, vector<128x128xbf16>
    tpu.vector_store %arg6[%c0_16, %c0_17], %33 {strides = array<i32>} : memref<128x128xbf16, #tpu.memory_space<vmem>>, vector<128x128xbf16>,
    return
  }
  func.func @transform_0(%arg0: i32) -> (i32, i32) {
    %c0_i32 = arith.constant 0 : i32
    %c0_i32_0 = arith.constant 0 : i32
    %c0_i32_1 = arith.constant 0 : i32
    return %c0_i32, %c0_i32_0 : i32, i32
  }
  func.func @transform_1(%arg0: i32) -> (i32, i32) {
    %c0_i32 = arith.constant 0 : i32
    %c0_i32_0 = arith.constant 0 : i32
    %c0_i32_1 = arith.constant 0 : i32
    return %c0_i32, %c0_i32_0 : i32, i32
  }
  func.func @transform_2(%arg0: i32) -> (i32, i32) {
    %c0_i32 = arith.constant 0 : i32
    %c0_i32_0 = arith.constant 0 : i32
    %c0_i32_1 = arith.constant 0 : i32
    return %c0_i32, %c0_i32_0 : i32, i32
  }
  func.func @transform_3(%arg0: i32) -> (i32, i32) {
    %c0_i32 = arith.constant 0 : i32
    %c0_i32_0 = arith.constant 0 : i32
    %c0_i32_1 = arith.constant 0 : i32
    return %c0_i32, %c0_i32_0 : i32, i32
  }
  func.func @transform_4(%arg0: i32) -> (i32, i32) {
    %c0_i32 = arith.constant 0 : i32
    %c0_i32_0 = arith.constant 0 : i32
    %c0_i32_1 = arith.constant 0 : i32
    return %c0_i32, %c0_i32_0 : i32, i32
  }
  func.func @transform_5(%arg0: i32) -> (i32, i32) {
    %c0_i32 = arith.constant 0 : i32
    %c0_i32_0 = arith.constant 0 : i32
    %c0_i32_1 = arith.constant 0 : i32
    return %c0_i32, %c0_i32_0 : i32, i32
  }
}

</mosaic_0001>

<llo_original>
// kernel: encoder_block.4
$region0: #{encoder_block.4}
  #allocation0 [shape = 'u32[]', space=smem, size = 0x4, offset = 0x4, fixed_abs, tag = 'smem constant byte address 0x4 - core index']
  #allocation1 [shape = 'u32[72,128]{1,0:T(1,128)}', space=vmem, size = 0x9000, scoped, tag = 'internal scratch']
  %s0 = inlined_call_operand.vmem [shape: bf16[128,32], index: 0, kind: input, shape index: {}]
  %s1 = inlined_call_operand.vmem [shape: bf16[32,256], index: 1, kind: input, shape index: {}]
  %s2 = inlined_call_operand.vmem [shape: f32[1,256], index: 2, kind: input, shape index: {}]
  %s3 = inlined_call_operand.vmem [shape: f32[1,256], index: 3, kind: input, shape index: {}]
  %s4 = inlined_call_operand.vmem [shape: bf16[128,256], index: 4, kind: output, shape index: {}]
  %s5 = sld [smem:[#allocation0]]
  $region26: #{encoder_block.4} parent=0
    _
  %s7 = ssub.s32 1, %s5
  %s8 = scalar_select 0, %s7, %s5
  // Predicated region
  $region2: #{encoder_block.4} parent=0 // pred_check
    _
  $region3: #{encoder_block.4} parent=0 // pred_check_branch
    %10 = sbr.rel (0) target = $region5
  $region4: #{encoder_block.4} parent=0 // pred_region
    _
  $region5: #{encoder_block.4} parent=0 // pred_fallthru
    _
  // Predicated region
  $region6: #{encoder_block.4} parent=0 // pred_check
    _
  $region7: #{encoder_block.4} parent=0 // pred_check_branch
    %12 = sbr.rel (0) target = $region9
  $region8: #{encoder_block.4} parent=0 // pred_region
    _
  $region9: #{encoder_block.4} parent=0 // pred_fallthru
    _
  // Predicated region
  $region10: #{encoder_block.4} parent=0 // pred_check
    _
  $region11: #{encoder_block.4} parent=0 // pred_check_branch
    %14 = sbr.rel (0) target = $region13
  $region12: #{encoder_block.4} parent=0 // pred_region
    _
  $region13: #{encoder_block.4} parent=0 // pred_fallthru
    _
  // Predicated region
  $region14: #{encoder_block.4} parent=0 // pred_check
    _
  $region15: #{encoder_block.4} parent=0 // pred_check_branch
    %16 = sbr.rel (0) target = $region17
  $region16: #{encoder_block.4} parent=0 // pred_region
    _
  $region17: #{encoder_block.4} parent=0 // pred_fallthru
    _
  %v18 = vld [vmem:[%s0] sm:$0xf]
  %v19 = vld [vmem:[%s0 + $0x4] sm:$0xf]
  %v20 = vld [vmem:[%s0 + $0x8] sm:$0xf]
  %v21 = vld [vmem:[%s0 + $0xc] sm:$0xf]
  %v22 = vld [vmem:[%s0 + $0x10] sm:$0xf]
  %v23 = vld [vmem:[%s0 + $0x14] sm:$0xf]
  %v24 = vld [vmem:[%s0 + $0x18] sm:$0xf]
  %v25 = vld [vmem:[%s0 + $0x1c] sm:$0xf]
  %v26 = vld [vmem:[%s0 + $0x20] sm:$0xf]
  %v27 = vld [vmem:[%s0 + $0x24] sm:$0xf]
  %v28 = vld [vmem:[%s0 + $0x28] sm:$0xf]
  %v29 = vld [vmem:[%s0 + $0x2c] sm:$0xf]
  %v30 = vld [vmem:[%s0 + $0x30] sm:$0xf]
  %v31 = vld [vmem:[%s0 + $0x34] sm:$0xf]
  %v32 = vld [vmem:[%s0 + $0x38] sm:$0xf]
  %v33 = vld [vmem:[%s0 + $0x3c] sm:$0xf]
  %v34 = vld [vmem:[%s1] sm:$0xff]
  %v35 = vld [vmem:[%s1 + $0x8] sm:$0xff]
  %v36 = vld [vmem:[%s1 + $0x10] sm:$0xff]
  %v37 = vld [vmem:[%s1 + $0x18] sm:$0xff]
  %v54 = vunpack.c.l.b16 %v18
  %v55 = vunpack.c.l.b16 %v19
  %v56 = vunpack.c.l.b16 %v20
  %v57 = vunpack.c.l.b16 %v21
  %v58 = vunpack.c.l.b16 %v22
  %v59 = vunpack.c.l.b16 %v23
  %v60 = vunpack.c.l.b16 %v24
  %v61 = vunpack.c.l.b16 %v25
  %v62 = vunpack.c.l.b16 %v26
  %v63 = vunpack.c.l.b16 %v27
  %v64 = vunpack.c.l.b16 %v28
  %v65 = vunpack.c.l.b16 %v29
  %v66 = vunpack.c.l.b16 %v30
  %v67 = vunpack.c.l.b16 %v31
  %v68 = vunpack.c.l.b16 %v32
  %v69 = vunpack.c.l.b16 %v33
  %v70 = vpack.c.b16 %v55, %v54
  %v71 = vpack.c.b16 %v57, %v56
  %v72 = vpack.c.b16 %v59, %v58
  %v73 = vpack.c.b16 %v61, %v60
  %v74 = vpack.c.b16 %v63, %v62
  %v75 = vpack.c.b16 %v65, %v64
  %v76 = vpack.c.b16 %v67, %v66
  %v77 = vpack.c.b16 %v69, %v68
  %v82 = vunpack.c.l.b16 %v34
  %v83 = vunpack.c.h.b16 %v34
  %v84 = vunpack.c.l.b16 %v35
  %v85 = vunpack.c.h.b16 %v35
  %v86 = vunpack.c.l.b16 %v36
  %v87 = vunpack.c.h.b16 %v36
  %v88 = vunpack.c.l.b16 %v37
  %v89 = vunpack.c.h.b16 %v37
  %v90 = vpack.c.b16 %v84, %v82
  %v91 = vpack.c.b16 %v85, %v83
  %v92 = vpack.c.b16 %v88, %v86
  %v93 = vpack.c.b16 %v89, %v87
  %vm98 = vcmask 261120
  %v100 = vsel %vm98, %v70, 0
  %v103 = vsel %vm98, %v71, 0
  %v106 = vsel %vm98, %v72, 0
  %v109 = vsel %vm98, %v73, 0
  %v112 = vsel %vm98, %v74, 0
  %v115 = vsel %vm98, %v75, 0
  %v118 = vsel %vm98, %v76, 0
  %v121 = vsel %vm98, %v77, 0
  %123 = vmatpush.bf16.msra.mxu0 0
  %124 = vmatpush.bf16.msra.mxu0 0
  %125 = vmatpush.bf16.msra.mxu0 0
  %126 = vmatpush.bf16.msra.mxu0 0
  %127 = vmatpush.bf16.msra.mxu0 0
  %128 = vmatpush.bf16.msra.mxu0 0
  %129 = vmatpush.bf16.msra.mxu0 %v92
  %130 = vmatpush.bf16.msra.mxu0 %v90
  %131 = vmatmul.bf16.gmra.mxu0 %v100
  %v132 = vpop.f32.mrf.mxu0
  %v133 = vadd.f32 0.0, %v132
  %v134 = vpop.f32.mrf.mxu0
  %v135 = vadd.f32 0.0, %v134
  %136 = vmatmul.bf16.gmra.mxu0 %v103
  %v137 = vpop.f32.mrf.mxu0
  %v138 = vadd.f32 0.0, %v137
  %v139 = vpop.f32.mrf.mxu0
  %v140 = vadd.f32 0.0, %v139
  %141 = vmatmul.bf16.gmra.mxu0 %v106
  %v142 = vpop.f32.mrf.mxu0
  %v143 = vadd.f32 0.0, %v142
  %v144 = vpop.f32.mrf.mxu0
  %v145 = vadd.f32 0.0, %v144
  %146 = vmatmul.bf16.gmra.mxu0 %v109
  %v147 = vpop.f32.mrf.mxu0
  %v148 = vadd.f32 0.0, %v147
  %v149 = vpop.f32.mrf.mxu0
  %v150 = vadd.f32 0.0, %v149
  %151 = vmatmul.bf16.gmra.mxu0 %v112
  %v152 = vpop.f32.mrf.mxu0
  %v153 = vadd.f32 0.0, %v152
  %v154 = vpop.f32.mrf.mxu0
  %v155 = vadd.f32 0.0, %v154
  %156 = vmatmul.bf16.gmra.mxu0 %v115
  %v157 = vpop.f32.mrf.mxu0
  %v158 = vadd.f32 0.0, %v157
  %v159 = vpop.f32.mrf.mxu0
  %v160 = vadd.f32 0.0, %v159
  %161 = vmatmul.bf16.gmra.mxu0 %v118
  %v162 = vpop.f32.mrf.mxu0
  %v163 = vadd.f32 0.0, %v162
  %v164 = vpop.f32.mrf.mxu0
  %v165 = vadd.f32 0.0, %v164
  %166 = vmatmul.bf16.gmra.mxu0 %v121
  %v167 = vpop.f32.mrf.mxu0
  %v168 = vadd.f32 0.0, %v167
  %v169 = vpop.f32.mrf.mxu0
  %v170 = vadd.f32 0.0, %v169
  %171 = vdwg.mxu0
  %172 = vmatpush.bf16.msra.mxu0 0
  %173 = vmatpush.bf16.msra.mxu0 0
  %174 = vmatpush.bf16.msra.mxu0 0
  %175 = vmatpush.bf16.msra.mxu0 0
  %176 = vmatpush.bf16.msra.mxu0 0
  %177 = vmatpush.bf16.msra.mxu0 0
  %178 = vmatpush.bf16.msra.mxu0 %v93
  %179 = vmatpush.bf16.msra.mxu0 %v91
  %180 = vmatmul.bf16.gmra.mxu0 %v100
  %v181 = vpop.f32.mrf.mxu0
  %v182 = vadd.f32 0.0, %v181
  %v183 = vpop.f32.mrf.mxu0
  %v184 = vadd.f32 0.0, %v183
  %185 = vmatmul.bf16.gmra.mxu0 %v103
  %v186 = vpop.f32.mrf.mxu0
  %v187 = vadd.f32 0.0, %v186
  %v188 = vpop.f32.mrf.mxu0
  %v189 = vadd.f32 0.0, %v188
  %190 = vmatmul.bf16.gmra.mxu0 %v106
  %v191 = vpop.f32.mrf.mxu0
  %v192 = vadd.f32 0.0, %v191
  %v193 = vpop.f32.mrf.mxu0
  %v194 = vadd.f32 0.0, %v193
  %195 = vmatmul.bf16.gmra.mxu0 %v109
  %v196 = vpop.f32.mrf.mxu0
  %v197 = vadd.f32 0.0, %v196
  %v198 = vpop.f32.mrf.mxu0
  %v199 = vadd.f32 0.0, %v198
  %200 = vmatmul.bf16.gmra.mxu0 %v112
  %v201 = vpop.f32.mrf.mxu0
  %v202 = vadd.f32 0.0, %v201
  %v203 = vpop.f32.mrf.mxu0
  %v204 = vadd.f32 0.0, %v203
  %205 = vmatmul.bf16.gmra.mxu0 %v115
  %v206 = vpop.f32.mrf.mxu0
  %v207 = vadd.f32 0.0, %v206
  %v208 = vpop.f32.mrf.mxu0
  %v209 = vadd.f32 0.0, %v208
  %210 = vmatmul.bf16.gmra.mxu0 %v118
  %v211 = vpop.f32.mrf.mxu0
  %v212 = vadd.f32 0.0, %v211
  %v213 = vpop.f32.mrf.mxu0
  %v214 = vadd.f32 0.0, %v213
  %215 = vmatmul.bf16.gmra.mxu0 %v121
  %v216 = vpop.f32.mrf.mxu0
  %v217 = vadd.f32 0.0, %v216
  %v218 = vpop.f32.mrf.mxu0
  %v219 = vadd.f32 0.0, %v218
  %220 = vdwg.mxu0
  %v221 = vld [vmem:[%s2] sm:$0x3]
  %v222 = vld [vmem:[%s3] sm:$0x3]
  %v223 = vadd.f32 %v133, %v135
  %v224 = vadd.f32 %v223, %v138
  %v225 = vadd.f32 %v224, %v140
  %v226 = vadd.f32 %v225, %v143
  %v227 = vadd.f32 %v226, %v145
  %v228 = vadd.f32 %v227, %v148
  %v229 = vadd.f32 %v228, %v150
  %v230 = vadd.f32 %v229, %v153
  %v231 = vadd.f32 %v230, %v155
  %v232 = vadd.f32 %v231, %v158
  %v233 = vadd.f32 %v232, %v160
  %v234 = vadd.f32 %v233, %v163
  %v235 = vadd.f32 %v234, %v165
  %v236 = vadd.f32 %v235, %v168
  %v237 = vadd.f32 %v236, %v170
  %v238 = vrot.slane %v237, 4
  %v239 = vadd.f32 %v237, %v238
  %v240 = vrot.slane %v239, 2
  %v241 = vadd.f32 %v239, %v240
  %v242 = vrot.slane %v241, 1
  %v243 = vadd.f32 %v241, %v242
  %v244 = vadd.f32 %v182, %v184
  %v245 = vadd.f32 %v244, %v187
  %v246 = vadd.f32 %v245, %v189
  %v247 = vadd.f32 %v246, %v192
  %v248 = vadd.f32 %v247, %v194
  %v249 = vadd.f32 %v248, %v197
  %v250 = vadd.f32 %v249, %v199
  %v251 = vadd.f32 %v250, %v202
  %v252 = vadd.f32 %v251, %v204
  %v253 = vadd.f32 %v252, %v207
  %v254 = vadd.f32 %v253, %v209
  %v255 = vadd.f32 %v254, %v212
  %v256 = vadd.f32 %v255, %v214
  %v257 = vadd.f32 %v256, %v217
  %v258 = vadd.f32 %v257, %v219
  %v259 = vrot.slane %v258, 4
  %v260 = vadd.f32 %v258, %v259
  %v261 = vrot.slane %v260, 2
  %v262 = vadd.f32 %v260, %v261
  %v263 = vrot.slane %v262, 1
  %v264 = vadd.f32 %v262, %v263
  %v265 = vmul.f32 %v243, 0.0078125
  %v266 = vmul.f32 %v264, 0.0078125
  %v267 = vmul.f32 %v133, %v133
  %v268 = vmul.f32 %v182, %v182
  %v269 = vmul.f32 %v135, %v135
  %v270 = vmul.f32 %v184, %v184
  %v271 = vmul.f32 %v138, %v138
  %v272 = vmul.f32 %v187, %v187
  %v273 = vmul.f32 %v140, %v140
  %v274 = vmul.f32 %v189, %v189
  %v275 = vmul.f32 %v143, %v143
  %v276 = vmul.f32 %v192, %v192
  %v277 = vmul.f32 %v145, %v145
  %v278 = vmul.f32 %v194, %v194
  %v279 = vmul.f32 %v148, %v148
  %v280 = vmul.f32 %v197, %v197
  %v281 = vmul.f32 %v150, %v150
  %v282 = vmul.f32 %v199, %v199
  %v283 = vmul.f32 %v153, %v153
  %v284 = vmul.f32 %v202, %v202
  %v285 = vmul.f32 %v155, %v155
  %v286 = vmul.f32 %v204, %v204
  %v287 = vmul.f32 %v158, %v158
  %v288 = vmul.f32 %v207, %v207
  %v289 = vmul.f32 %v160, %v160
  %v290 = vmul.f32 %v209, %v209
  %v291 = vmul.f32 %v163, %v163
  %v292 = vmul.f32 %v212, %v212
  %v293 = vmul.f32 %v165, %v165
  %v294 = vmul.f32 %v214, %v214
  %v295 = vmul.f32 %v168, %v168
  %v296 = vmul.f32 %v217, %v217
  %v297 = vmul.f32 %v170, %v170
  %v298 = vmul.f32 %v219, %v219
  %v299 = vadd.f32 %v267, %v269
  %v300 = vadd.f32 %v299, %v271
  %v301 = vadd.f32 %v300, %v273
  %v302 = vadd.f32 %v301, %v275
  %v303 = vadd.f32 %v302, %v277
  %v304 = vadd.f32 %v303, %v279
  %v305 = vadd.f32 %v304, %v281
  %v306 = vadd.f32 %v305, %v283
  %v307 = vadd.f32 %v306, %v285
  %v308 = vadd.f32 %v307, %v287
  %v309 = vadd.f32 %v308, %v289
  %v310 = vadd.f32 %v309, %v291
  %v311 = vadd.f32 %v310, %v293
  %v312 = vadd.f32 %v311, %v295
  %v313 = vadd.f32 %v312, %v297
  %v314 = vrot.slane %v313, 4
  %v315 = vadd.f32 %v313, %v314
  %v316 = vrot.slane %v315, 2
  %v317 = vadd.f32 %v315, %v316
  %v318 = vrot.slane %v317, 1
  %v319 = vadd.f32 %v317, %v318
  %v320 = vadd.f32 %v268, %v270
  %v321 = vadd.f32 %v320, %v272
  %v322 = vadd.f32 %v321, %v274
  %v323 = vadd.f32 %v322, %v276
  %v324 = vadd.f32 %v323, %v278
  %v325 = vadd.f32 %v324, %v280
  %v326 = vadd.f32 %v325, %v282
  %v327 = vadd.f32 %v326, %v284
  %v328 = vadd.f32 %v327, %v286
  %v329 = vadd.f32 %v328, %v288
  %v330 = vadd.f32 %v329, %v290
  %v331 = vadd.f32 %v330, %v292
  %v332 = vadd.f32 %v331, %v294
  %v333 = vadd.f32 %v332, %v296
  %v334 = vadd.f32 %v333, %v298
  %v335 = vrot.slane %v334, 4
  %v336 = vadd.f32 %v334, %v335
  %v337 = vrot.slane %v336, 2
  %v338 = vadd.f32 %v336, %v337
  %v339 = vrot.slane %v338, 1
  %v340 = vadd.f32 %v338, %v339
  %v341 = vmul.f32 %v319, 0.0078125
  %v342 = vmul.f32 %v340, 0.0078125
  %v343 = vmul.f32 %v265, %v265
  %v344 = vmul.f32 %v266, %v266
  %v345 = vsub.f32 %v341, %v343
  %v346 = vsub.f32 %v342, %v344
  %v347 = vmax.f32 %v345, 0.0
  %v348 = vmax.f32 %v346, 0.0
  %v349 = vadd.f32 %v347, 1e-05
  %v350 = vadd.f32 %v348, 1e-05
  %v351 = vrsqrt.pop %v349
  %v352 = vmul.f32 %v351, %v349
  %v353 = vmul.f32 %v352, %v351
  %v354 = vmul.f32 0.5, %v353
  %v355 = vsub.f32 1.5, %v354
  %v356 = vmul.f32 %v351, %v355
  %vm357 = vweird.f32 %v349
  %vm358 = vweird.f32 %v351
  %vm359 = vmor %vm357, %vm358
  %v360 = vsel %vm359, %v351, %v356
  %v361 = vrsqrt.pop %v350
  %v362 = vmul.f32 %v361, %v350
  %v363 = vmul.f32 %v362, %v361
  %v364 = vmul.f32 0.5, %v363
  %v365 = vsub.f32 1.5, %v364
  %v366 = vmul.f32 %v361, %v365
  %vm367 = vweird.f32 %v350
  %vm368 = vweird.f32 %v361
  %vm369 = vmor %vm367, %vm368
  %v370 = vsel %vm369, %v361, %v366
  %v373 = vrot.slane %v370, 7
  %vm374 = vcmask 1040384
  %v375 = vsel %vm374, %v360, %v373
  %v377 = vmul.f32 %v221, %v375
  %v379 = vperm.slane %v377, 0
  %v380 = vperm.slane %v377, 1
  %v383 = vmul.f32 %v265, %v379
  %v384 = vmul.f32 %v266, %v380
  %v387 = vrot.slane %v384, 7
  %v388 = vsel %vm374, %v383, %v387
  %v390 = vsub.f32 %v222, %v388
  %v391 = vmul.f32 %v133, %v379
  %v392 = vmul.f32 %v182, %v380
  %v393 = vmul.f32 %v135, %v379
  %v394 = vmul.f32 %v184, %v380
  %v395 = vmul.f32 %v138, %v379
  %v396 = vmul.f32 %v187, %v380
  %v397 = vmul.f32 %v140, %v379
  %v398 = vmul.f32 %v189, %v380
  %v399 = vmul.f32 %v143, %v379
  %v400 = vmul.f32 %v192, %v380
  %v401 = vmul.f32 %v145, %v379
  %v402 = vmul.f32 %v194, %v380
  %v403 = vmul.f32 %v148, %v379
  %v404 = vmul.f32 %v197, %v380
  %v405 = vmul.f32 %v150, %v379
  %v406 = vmul.f32 %v199, %v380
  %v407 = vmul.f32 %v153, %v379
  %v408 = vmul.f32 %v202, %v380
  %v409 = vmul.f32 %v155, %v379
  %v410 = vmul.f32 %v204, %v380
  %v411 = vmul.f32 %v158, %v379
  %v412 = vmul.f32 %v207, %v380
  %v413 = vmul.f32 %v160, %v379
  %v414 = vmul.f32 %v209, %v380
  %v415 = vmul.f32 %v163, %v379
  %v416 = vmul.f32 %v212, %v380
  %v417 = vmul.f32 %v165, %v379
  %v418 = vmul.f32 %v214, %v380
  %v419 = vmul.f32 %v168, %v379
  %v420 = vmul.f32 %v217, %v380
  %v421 = vmul.f32 %v170, %v379
  %v422 = vmul.f32 %v219, %v380
  %v424 = vperm.slane %v390, 0
  %v425 = vperm.slane %v390, 1
  %v428 = vadd.f32 %v391, %v424
  %v429 = vadd.f32 %v392, %v425
  %v430 = vadd.f32 %v393, %v424
  %v431 = vadd.f32 %v394, %v425
  %v432 = vadd.f32 %v395, %v424
  %v433 = vadd.f32 %v396, %v425
  %v434 = vadd.f32 %v397, %v424
  %v435 = vadd.f32 %v398, %v425
  %v436 = vadd.f32 %v399, %v424
  %v437 = vadd.f32 %v400, %v425
  %v438 = vadd.f32 %v401, %v424
  %v439 = vadd.f32 %v402, %v425
  %v440 = vadd.f32 %v403, %v424
  %v441 = vadd.f32 %v404, %v425
  %v442 = vadd.f32 %v405, %v424
  %v443 = vadd.f32 %v406, %v425
  %v444 = vadd.f32 %v407, %v424
  %v445 = vadd.f32 %v408, %v425
  %v446 = vadd.f32 %v409, %v424
  %v447 = vadd.f32 %v410, %v425
  %v448 = vadd.f32 %v411, %v424
  %v449 = vadd.f32 %v412, %v425
  %v450 = vadd.f32 %v413, %v424
  %v451 = vadd.f32 %v414, %v425
  %v452 = vadd.f32 %v415, %v424
  %v453 = vadd.f32 %v416, %v425
  %v454 = vadd.f32 %v417, %v424
  %v455 = vadd.f32 %v418, %v425
  %v456 = vadd.f32 %v419, %v424
  %v457 = vadd.f32 %v420, %v425
  %v458 = vadd.f32 %v421, %v424
  %v459 = vadd.f32 %v422, %v425
  %v460 = vmax.f32 %v428, 0.0
  %v461 = vmax.f32 %v429, 0.0
  %v462 = vmax.f32 %v430, 0.0
  %v463 = vmax.f32 %v431, 0.0
  %v464 = vmax.f32 %v432, 0.0
  %v465 = vmax.f32 %v433, 0.0
  %v466 = vmax.f32 %v434, 0.0
  %v467 = vmax.f32 %v435, 0.0
  %v468 = vmax.f32 %v436, 0.0
  %v469 = vmax.f32 %v437, 0.0
  %v470 = vmax.f32 %v438, 0.0
  %v471 = vmax.f32 %v439, 0.0
  %v472 = vmax.f32 %v440, 0.0
  %v473 = vmax.f32 %v441, 0.0
  %v474 = vmax.f32 %v442, 0.0
  %v475 = vmax.f32 %v443, 0.0
  %v476 = vmax.f32 %v444, 0.0
  %v477 = vmax.f32 %v445, 0.0
  %v478 = vmax.f32 %v446, 0.0
  %v479 = vmax.f32 %v447, 0.0
  %v480 = vmax.f32 %v448, 0.0
  %v481 = vmax.f32 %v449, 0.0
  %v482 = vmax.f32 %v450, 0.0
  %v483 = vmax.f32 %v451, 0.0
  %v484 = vmax.f32 %v452, 0.0
  %v485 = vmax.f32 %v453, 0.0
  %v486 = vmax.f32 %v454, 0.0
  %v487 = vmax.f32 %v455, 0.0
  %v488 = vmax.f32 %v456, 0.0
  %v489 = vmax.f32 %v457, 0.0
  %v490 = vmax.f32 %v458, 0.0
  %v491 = vmax.f32 %v459, 0.0
  %v492 = vpack.c.bf16 %v461, %v460
  %v493 = vpack.c.bf16 %v463, %v462
  %v494 = vpack.c.bf16 %v465, %v464
  %v495 = vpack.c.bf16 %v467, %v466
  %v496 = vpack.c.bf16 %v469, %v468
  %v497 = vpack.c.bf16 %v471, %v470
  %v498 = vpack.c.bf16 %v473, %v472
  %v499 = vpack.c.bf16 %v475, %v474
  %v500 = vpack.c.bf16 %v477, %v476
  %v501 = vpack.c.bf16 %v479, %v478
  %v502 = vpack.c.bf16 %v481, %v480
  %v503 = vpack.c.bf16 %v483, %v482
  %v504 = vpack.c.bf16 %v485, %v484
  %v505 = vpack.c.bf16 %v487, %v486
  %v506 = vpack.c.bf16 %v489, %v488
  %v507 = vpack.c.bf16 %v491, %v490
  %508 = vst [vmem:[%s4] sm:$0xff] %v492
  %509 = vst [vmem:[%s4 + $0x8] sm:$0xff] %v493
  %510 = vst [vmem:[%s4 + $0x10] sm:$0xff] %v494
  %511 = vst [vmem:[%s4 + $0x18] sm:$0xff] %v495
  %512 = vst [vmem:[%s4 + $0x20] sm:$0xff] %v496
  %513 = vst [vmem:[%s4 + $0x28] sm:$0xff] %v497
  %514 = vst [vmem:[%s4 + $0x30] sm:$0xff] %v498
  %515 = vst [vmem:[%s4 + $0x38] sm:$0xff] %v499
  %516 = vst [vmem:[%s4 + $0x40] sm:$0xff] %v500
  %517 = vst [vmem:[%s4 + $0x48] sm:$0xff] %v501
  %518 = vst [vmem:[%s4 + $0x50] sm:$0xff] %v502
  %519 = vst [vmem:[%s4 + $0x58] sm:$0xff] %v503
  %520 = vst [vmem:[%s4 + $0x60] sm:$0xff] %v504
  %521 = vst [vmem:[%s4 + $0x68] sm:$0xff] %v505
  %522 = vst [vmem:[%s4 + $0x70] sm:$0xff] %v506
  %523 = vst [vmem:[%s4 + $0x78] sm:$0xff] %v507
  // Predicated region
  $region18: #{encoder_block.4} parent=0 // pred_check
    _
  $region19: #{encoder_block.4} parent=0 // pred_check_branch
    %525 = sbr.rel (0) target = $region21
  $region20: #{encoder_block.4} parent=0 // pred_region
    _
  $region21: #{encoder_block.4} parent=0 // pred_fallthru
    _
  // Predicated region
  $region22: #{encoder_block.4} parent=0 // pred_check
    _
  $region23: #{encoder_block.4} parent=0 // pred_check_branch
    %527 = sbr.rel (0) target = $region25
  $region24: #{encoder_block.4} parent=0 // pred_region
    _
  $region25: #{encoder_block.4} parent=0 // pred_fallthru
    _

// kernel: encoder_block.6
$region0: #{encoder_block.6}
  #allocation0 [shape = 'u32[]', space=smem, size = 0x4, offset = 0x4, fixed_abs, tag = 'smem constant byte address 0x4 - core index']
  #allocation1 [shape = 'u32[72,128]{1,0:T(1,128)}', space=vmem, size = 0x9000, scoped, tag = 'internal scratch']
  %s0 = inlined_call_operand.vmem [shape: bf16[128,80], index: 0, kind: input, shape index: {}]
  %s1 = inlined_call_operand.vmem [shape: bf16[80,128], index: 1, kind: input, shape index: {}]
  %s2 = inlined_call_operand.vmem [shape: f32[1,128], index: 2, kind: input, shape index: {}]
  %s3 = inlined_call_operand.vmem [shape: f32[1,128], index: 3, kind: input, shape index: {}]
  %s4 = inlined_call_operand.vmem [shape: bf16[128,128], index: 4, kind: output, shape index: {}]
  %s5 = sld [smem:[#allocation0]]
  $region26: #{encoder_block.6} parent=0
    _
  %s7 = ssub.s32 1, %s5
  %s8 = scalar_select 0, %s7, %s5
  // Predicated region
  $region2: #{encoder_block.6} parent=0 // pred_check
    _
  $region3: #{encoder_block.6} parent=0 // pred_check_branch
    %10 = sbr.rel (0) target = $region5
  $region4: #{encoder_block.6} parent=0 // pred_region
    _
  $region5: #{encoder_block.6} parent=0 // pred_fallthru
    _
  // Predicated region
  $region6: #{encoder_block.6} parent=0 // pred_check
    _
  $region7: #{encoder_block.6} parent=0 // pred_check_branch
    %12 = sbr.rel (0) target = $region9
  $region8: #{encoder_block.6} parent=0 // pred_region
    _
  $region9: #{encoder_block.6} parent=0 // pred_fallthru
    _
  // Predicated region
  $region10: #{encoder_block.6} parent=0 // pred_check
    _
  $region11: #{encoder_block.6} parent=0 // pred_check_branch
    %14 = sbr.rel (0) target = $region13
  $region12: #{encoder_block.6} parent=0 // pred_region
    _
  $region13: #{encoder_block.6} parent=0 // pred_fallthru
    _
  // Predicated region
  $region14: #{encoder_block.6} parent=0 // pred_check
    _
  $region15: #{encoder_block.6} parent=0 // pred_check_branch
    %16 = sbr.rel (0) target = $region17
  $region16: #{encoder_block.6} parent=0 // pred_region
    _
  $region17: #{encoder_block.6} parent=0 // pred_fallthru
    _
  %v18 = vld [vmem:[%s0] sm:$0xf]
  %v19 = vld [vmem:[%s0 + $0x4] sm:$0xf]
  %v20 = vld [vmem:[%s0 + $0x8] sm:$0xf]
  %v21 = vld [vmem:[%s0 + $0xc] sm:$0xf]
  %v22 = vld [vmem:[%s0 + $0x10] sm:$0xf]
  %v23 = vld [vmem:[%s0 + $0x14] sm:$0xf]
  %v24 = vld [vmem:[%s0 + $0x18] sm:$0xf]
  %v25 = vld [vmem:[%s0 + $0x1c] sm:$0xf]
  %v26 = vld [vmem:[%s0 + $0x20] sm:$0xf]
  %v27 = vld [vmem:[%s0 + $0x24] sm:$0xf]
  %v28 = vld [vmem:[%s0 + $0x28] sm:$0xf]
  %v29 = vld [vmem:[%s0 + $0x2c] sm:$0xf]
  %v30 = vld [vmem:[%s0 + $0x30] sm:$0xf]
  %v31 = vld [vmem:[%s0 + $0x34] sm:$0xf]
  %v32 = vld [vmem:[%s0 + $0x38] sm:$0xf]
  %v33 = vld [vmem:[%s0 + $0x3c] sm:$0xf]
  %v34 = vld [vmem:[%s1] sm:$0xf]
  %v35 = vld [vmem:[%s1 + $0x4] sm:$0xf]
  %v36 = vld [vmem:[%s1 + $0x8] sm:$0xf]
  %v37 = vld [vmem:[%s1 + $0xc] sm:$0xf]
  %v38 = vld [vmem:[%s1 + $0x10] sm:$0xf]
  %v39 = vld [vmem:[%s1 + $0x14] sm:$0xf]
  %v40 = vld [vmem:[%s1 + $0x18] sm:$0xf]
  %v41 = vld [vmem:[%s1 + $0x1c] sm:$0xf]
  %v42 = vld [vmem:[%s1 + $0x20] sm:$0xf]
  %v43 = vld [vmem:[%s1 + $0x24] sm:$0xf]
  %v60 = vunpack.c.l.b16 %v18
  %v61 = vunpack.c.l.b16 %v19
  %v62 = vunpack.c.l.b16 %v20
  %v63 = vunpack.c.l.b16 %v21
  %v64 = vunpack.c.l.b16 %v22
  %v65 = vunpack.c.l.b16 %v23
  %v66 = vunpack.c.l.b16 %v24
  %v67 = vunpack.c.l.b16 %v25
  %v68 = vunpack.c.l.b16 %v26
  %v69 = vunpack.c.l.b16 %v27
  %v70 = vunpack.c.l.b16 %v28
  %v71 = vunpack.c.l.b16 %v29
  %v72 = vunpack.c.l.b16 %v30
  %v73 = vunpack.c.l.b16 %v31
  %v74 = vunpack.c.l.b16 %v32
  %v75 = vunpack.c.l.b16 %v33
  %v76 = vpack.c.b16 %v61, %v60
  %v77 = vpack.c.b16 %v63, %v62
  %v78 = vpack.c.b16 %v65, %v64
  %v79 = vpack.c.b16 %v67, %v66
  %v80 = vpack.c.b16 %v69, %v68
  %v81 = vpack.c.b16 %v71, %v70
  %v82 = vpack.c.b16 %v73, %v72
  %v83 = vpack.c.b16 %v75, %v74
  %v94 = vunpack.c.l.b16 %v34
  %v95 = vunpack.c.l.b16 %v35
  %v96 = vunpack.c.l.b16 %v36
  %v97 = vunpack.c.l.b16 %v37
  %v98 = vunpack.c.l.b16 %v38
  %v99 = vunpack.c.l.b16 %v39
  %v100 = vunpack.c.l.b16 %v40
  %v101 = vunpack.c.l.b16 %v41
  %v102 = vunpack.c.l.b16 %v42
  %v103 = vunpack.c.l.b16 %v43
  %v104 = vpack.c.b16 %v95, %v94
  %v105 = vpack.c.b16 %v97, %v96
  %v106 = vpack.c.b16 %v99, %v98
  %v107 = vpack.c.b16 %v101, %v100
  %v108 = vpack.c.b16 %v103, %v102
  %vm114 = vcmask 654336
  %v116 = vsel %vm114, %v76, 0
  %v119 = vsel %vm114, %v77, 0
  %v122 = vsel %vm114, %v78, 0
  %v125 = vsel %vm114, %v79, 0
  %v128 = vsel %vm114, %v80, 0
  %v131 = vsel %vm114, %v81, 0
  %v134 = vsel %vm114, %v82, 0
  %v137 = vsel %vm114, %v83, 0
  %139 = vmatpush.bf16.msra.mxu0 0
  %140 = vmatpush.bf16.msra.mxu0 0
  %141 = vmatpush.bf16.msra.mxu0 0
  %142 = vmatpush.bf16.msra.mxu0 %v108
  %143 = vmatpush.bf16.msra.mxu0 %v107
  %144 = vmatpush.bf16.msra.mxu0 %v106
  %145 = vmatpush.bf16.msra.mxu0 %v105
  %146 = vmatpush.bf16.msra.mxu0 %v104
  %147 = vmatmul.bf16.gmra.mxu0 %v116
  %v148 = vpop.f32.mrf.mxu0
  %v149 = vadd.f32 0.0, %v148
  %v150 = vpop.f32.mrf.mxu0
  %v151 = vadd.f32 0.0, %v150
  %152 = vmatmul.bf16.gmra.mxu0 %v119
  %v153 = vpop.f32.mrf.mxu0
  %v154 = vadd.f32 0.0, %v153
  %v155 = vpop.f32.mrf.mxu0
  %v156 = vadd.f32 0.0, %v155
  %157 = vmatmul.bf16.gmra.mxu0 %v122
  %v158 = vpop.f32.mrf.mxu0
  %v159 = vadd.f32 0.0, %v158
  %v160 = vpop.f32.mrf.mxu0
  %v161 = vadd.f32 0.0, %v160
  %162 = vmatmul.bf16.gmra.mxu0 %v125
  %v163 = vpop.f32.mrf.mxu0
  %v164 = vadd.f32 0.0, %v163
  %v165 = vpop.f32.mrf.mxu0
  %v166 = vadd.f32 0.0, %v165
  %167 = vmatmul.bf16.gmra.mxu0 %v128
  %v168 = vpop.f32.mrf.mxu0
  %v169 = vadd.f32 0.0, %v168
  %v170 = vpop.f32.mrf.mxu0
  %v171 = vadd.f32 0.0, %v170
  %172 = vmatmul.bf16.gmra.mxu0 %v131
  %v173 = vpop.f32.mrf.mxu0
  %v174 = vadd.f32 0.0, %v173
  %v175 = vpop.f32.mrf.mxu0
  %v176 = vadd.f32 0.0, %v175
  %177 = vmatmul.bf16.gmra.mxu0 %v134
  %v178 = vpop.f32.mrf.mxu0
  %v179 = vadd.f32 0.0, %v178
  %v180 = vpop.f32.mrf.mxu0
  %v181 = vadd.f32 0.0, %v180
  %182 = vmatmul.bf16.gmra.mxu0 %v137
  %v183 = vpop.f32.mrf.mxu0
  %v184 = vadd.f32 0.0, %v183
  %v185 = vpop.f32.mrf.mxu0
  %v186 = vadd.f32 0.0, %v185
  %187 = vdwg.mxu0
  %v188 = vld [vmem:[%s2] sm:$0x1]
  %v189 = vld [vmem:[%s3] sm:$0x1]
  %v190 = vadd.f32 %v149, %v151
  %v191 = vadd.f32 %v190, %v154
  %v192 = vadd.f32 %v191, %v156
  %v193 = vadd.f32 %v192, %v159
  %v194 = vadd.f32 %v193, %v161
  %v195 = vadd.f32 %v194, %v164
  %v196 = vadd.f32 %v195, %v166
  %v197 = vadd.f32 %v196, %v169
  %v198 = vadd.f32 %v197, %v171
  %v199 = vadd.f32 %v198, %v174
  %v200 = vadd.f32 %v199, %v176
  %v201 = vadd.f32 %v200, %v179
  %v202 = vadd.f32 %v201, %v181
  %v203 = vadd.f32 %v202, %v184
  %v204 = vadd.f32 %v203, %v186
  %v205 = vrot.slane %v204, 4
  %v206 = vadd.f32 %v204, %v205
  %v207 = vrot.slane %v206, 2
  %v208 = vadd.f32 %v206, %v207
  %v209 = vrot.slane %v208, 1
  %v210 = vadd.f32 %v208, %v209
  %v211 = vmul.f32 %v210, 0.0078125
  %v212 = vmul.f32 %v149, %v149
  %v213 = vmul.f32 %v151, %v151
  %v214 = vmul.f32 %v154, %v154
  %v215 = vmul.f32 %v156, %v156
  %v216 = vmul.f32 %v159, %v159
  %v217 = vmul.f32 %v161, %v161
  %v218 = vmul.f32 %v164, %v164
  %v219 = vmul.f32 %v166, %v166
  %v220 = vmul.f32 %v169, %v169
  %v221 = vmul.f32 %v171, %v171
  %v222 = vmul.f32 %v174, %v174
  %v223 = vmul.f32 %v176, %v176
  %v224 = vmul.f32 %v179, %v179
  %v225 = vmul.f32 %v181, %v181
  %v226 = vmul.f32 %v184, %v184
  %v227 = vmul.f32 %v186, %v186
  %v228 = vadd.f32 %v212, %v213
  %v229 = vadd.f32 %v228, %v214
  %v230 = vadd.f32 %v229, %v215
  %v231 = vadd.f32 %v230, %v216
  %v232 = vadd.f32 %v231, %v217
  %v233 = vadd.f32 %v232, %v218
  %v234 = vadd.f32 %v233, %v219
  %v235 = vadd.f32 %v234, %v220
  %v236 = vadd.f32 %v235, %v221
  %v237 = vadd.f32 %v236, %v222
  %v238 = vadd.f32 %v237, %v223
  %v239 = vadd.f32 %v238, %v224
  %v240 = vadd.f32 %v239, %v225
  %v241 = vadd.f32 %v240, %v226
  %v242 = vadd.f32 %v241, %v227
  %v243 = vrot.slane %v242, 4
  %v244 = vadd.f32 %v242, %v243
  %v245 = vrot.slane %v244, 2
  %v246 = vadd.f32 %v244, %v245
  %v247 = vrot.slane %v246, 1
  %v248 = vadd.f32 %v246, %v247
  %v249 = vmul.f32 %v248, 0.0078125
  %v250 = vmul.f32 %v211, %v211
  %v251 = vsub.f32 %v249, %v250
  %v252 = vmax.f32 %v251, 0.0
  %v253 = vadd.f32 %v252, 1e-05
  %v254 = vrsqrt.pop %v253
  %v255 = vmul.f32 %v254, %v253
  %v256 = vmul.f32 %v255, %v254
  %v257 = vmul.f32 0.5, %v256
  %v258 = vsub.f32 1.5, %v257
  %v259 = vmul.f32 %v254, %v258
  %vm260 = vweird.f32 %v253
  %vm261 = vweird.f32 %v254
  %vm262 = vmor %vm260, %vm261
  %v263 = vsel %vm262, %v254, %v259
  %v264 = vmul.f32 %v188, %v263
  %v265 = vmul.f32 %v211, %v264
  %v266 = vsub.f32 %v189, %v265
  %v268 = vperm.slane %v264, 0
  %v270 = vmul.f32 %v149, %v268
  %v271 = vmul.f32 %v151, %v268
  %v272 = vmul.f32 %v154, %v268
  %v273 = vmul.f32 %v156, %v268
  %v274 = vmul.f32 %v159, %v268
  %v275 = vmul.f32 %v161, %v268
  %v276 = vmul.f32 %v164, %v268
  %v277 = vmul.f32 %v166, %v268
  %v278 = vmul.f32 %v169, %v268
  %v279 = vmul.f32 %v171, %v268
  %v280 = vmul.f32 %v174, %v268
  %v281 = vmul.f32 %v176, %v268
  %v282 = vmul.f32 %v179, %v268
  %v283 = vmul.f32 %v181, %v268
  %v284 = vmul.f32 %v184, %v268
  %v285 = vmul.f32 %v186, %v268
  %v287 = vperm.slane %v266, 0
  %v289 = vadd.f32 %v270, %v287
  %v290 = vadd.f32 %v271, %v287
  %v291 = vadd.f32 %v272, %v287
  %v292 = vadd.f32 %v273, %v287
  %v293 = vadd.f32 %v274, %v287
  %v294 = vadd.f32 %v275, %v287
  %v295 = vadd.f32 %v276, %v287
  %v296 = vadd.f32 %v277, %v287
  %v297 = vadd.f32 %v278, %v287
  %v298 = vadd.f32 %v279, %v287
  %v299 = vadd.f32 %v280, %v287
  %v300 = vadd.f32 %v281, %v287
  %v301 = vadd.f32 %v282, %v287
  %v302 = vadd.f32 %v283, %v287
  %v303 = vadd.f32 %v284, %v287
  %v304 = vadd.f32 %v285, %v287
  %v305 = vmax.f32 %v289, 0.0
  %v306 = vmax.f32 %v290, 0.0
  %v307 = vmax.f32 %v291, 0.0
  %v308 = vmax.f32 %v292, 0.0
  %v309 = vmax.f32 %v293, 0.0
  %v310 = vmax.f32 %v294, 0.0
  %v311 = vmax.f32 %v295, 0.0
  %v312 = vmax.f32 %v296, 0.0
  %v313 = vmax.f32 %v297, 0.0
  %v314 = vmax.f32 %v298, 0.0
  %v315 = vmax.f32 %v299, 0.0
  %v316 = vmax.f32 %v300, 0.0
  %v317 = vmax.f32 %v301, 0.0
  %v318 = vmax.f32 %v302, 0.0
  %v319 = vmax.f32 %v303, 0.0
  %v320 = vmax.f32 %v304, 0.0
  %v321 = vpack.c.bf16 %v305, %v305
  %v322 = vpack.c.bf16 %v306, %v306
  %v323 = vpack.c.bf16 %v307, %v307
  %v324 = vpack.c.bf16 %v308, %v308
  %v325 = vpack.c.bf16 %v309, %v309
  %v326 = vpack.c.bf16 %v310, %v310
  %v327 = vpack.c.bf16 %v311, %v311
  %v328 = vpack.c.bf16 %v312, %v312
  %v329 = vpack.c.bf16 %v313, %v313
  %v330 = vpack.c.bf16 %v314, %v314
  %v331 = vpack.c.bf16 %v315, %v315
  %v332 = vpack.c.bf16 %v316, %v316
  %v333 = vpack.c.bf16 %v317, %v317
  %v334 = vpack.c.bf16 %v318, %v318
  %v335 = vpack.c.bf16 %v319, %v319
  %v336 = vpack.c.bf16 %v320, %v320
  %337 = vst [vmem:[%s4] sm:$0xf] %v321
  %338 = vst [vmem:[%s4 + $0x4] sm:$0xf] %v322
  %339 = vst [vmem:[%s4 + $0x8] sm:$0xf] %v323
  %340 = vst [vmem:[%s4 + $0xc] sm:$0xf] %v324
  %341 = vst [vmem:[%s4 + $0x10] sm:$0xf] %v325
  %342 = vst [vmem:[%s4 + $0x14] sm:$0xf] %v326
  %343 = vst [vmem:[%s4 + $0x18] sm:$0xf] %v327
  %344 = vst [vmem:[%s4 + $0x1c] sm:$0xf] %v328
  %345 = vst [vmem:[%s4 + $0x20] sm:$0xf] %v329
  %346 = vst [vmem:[%s4 + $0x24] sm:$0xf] %v330
  %347 = vst [vmem:[%s4 + $0x28] sm:$0xf] %v331
  %348 = vst [vmem:[%s4 + $0x2c] sm:$0xf] %v332
  %349 = vst [vmem:[%s4 + $0x30] sm:$0xf] %v333
  %350 = vst [vmem:[%s4 + $0x34] sm:$0xf] %v334
  %351 = vst [vmem:[%s4 + $0x38] sm:$0xf] %v335
  %352 = vst [vmem:[%s4 + $0x3c] sm:$0xf] %v336
  // Predicated region
  $region18: #{encoder_block.6} parent=0 // pred_check
    _
  $region19: #{encoder_block.6} parent=0 // pred_check_branch
    %354 = sbr.rel (0) target = $region21
  $region20: #{encoder_block.6} parent=0 // pred_region
    _
  $region21: #{encoder_block.6} parent=0 // pred_fallthru
    _
  // Predicated region
  $region22: #{encoder_block.6} parent=0 // pred_check
    _
  $region23: #{encoder_block.6} parent=0 // pred_check_branch
    %356 = sbr.rel (0) target = $region25
  $region24: #{encoder_block.6} parent=0 // pred_region
    _
  $region25: #{encoder_block.6} parent=0 // pred_fallthru
    _

// kernel: encoder_block.5
$region0: #{encoder_block.5}
  #allocation0 [shape = 'u32[]', space=smem, size = 0x4, offset = 0x4, fixed_abs, tag = 'smem constant byte address 0x4 - core index']
  #allocation1 [shape = 'u32[72,128]{1,0:T(1,128)}', space=vmem, size = 0x9000, scoped, tag = 'internal scratch']
  %s0 = inlined_call_operand.vmem [shape: bf16[128,80], index: 0, kind: input, shape index: {}]
  %s1 = inlined_call_operand.vmem [shape: bf16[80,128], index: 1, kind: input, shape index: {}]
  %s2 = inlined_call_operand.vmem [shape: f32[1,128], index: 2, kind: input, shape index: {}]
  %s3 = inlined_call_operand.vmem [shape: f32[1,128], index: 3, kind: input, shape index: {}]
  %s4 = inlined_call_operand.vmem [shape: bf16[128,256], index: 4, kind: input, shape index: {}]
  %s5 = inlined_call_operand.vmem [shape: bf16[128,128], index: 5, kind: output, shape index: {}]
  %s6 = sld [smem:[#allocation0]]
  $region71: #{encoder_block.5} parent=0
    _
  %s8 = ssub.s32 1, %s6
  %s9 = scalar_select 0, %s8, %s6
  $region1: #{encoder_block.5} parent=0
    #allocation2 [shape = 'u8[32768]{0}', space=vmem, size = 0x8000, scoped, tag = 'input window, operand 4, single buffered']
    // Predicated region
    $region2: #{encoder_block.5} parent=1 // pred_check
      _
    $region3: #{encoder_block.5} parent=1 // pred_check_branch
      %11 = sbr.rel (0) target = $region5
    $region4: #{encoder_block.5} parent=1 // pred_region
      _
    $region5: #{encoder_block.5} parent=1 // pred_fallthru
      _
    // Predicated region
    $region6: #{encoder_block.5} parent=1 // pred_check
      _
    $region7: #{encoder_block.5} parent=1 // pred_check_branch
      %13 = sbr.rel (0) target = $region9
    $region8: #{encoder_block.5} parent=1 // pred_region
      _
    $region9: #{encoder_block.5} parent=1 // pred_fallthru
      _
    // Predicated region
    $region10: #{encoder_block.5} parent=1 // pred_check
      _
    $region11: #{encoder_block.5} parent=1 // pred_check_branch
      %15 = sbr.rel (0) target = $region13
    $region12: #{encoder_block.5} parent=1 // pred_region
      _
    $region13: #{encoder_block.5} parent=1 // pred_fallthru
      _
    // Predicated region
    $region14: #{encoder_block.5} parent=1 // pred_check
      _
    $region15: #{encoder_block.5} parent=1 // pred_check_branch
      %17 = sbr.rel (0) target = $region17
    $region16: #{encoder_block.5} parent=1 // pred_region
      _
    $region17: #{encoder_block.5} parent=1 // pred_fallthru
      _
    // Predicated region
    $region18: #{encoder_block.5} parent=1 // pred_check
      _
    $region19: #{encoder_block.5} parent=1 // pred_check_branch
      %19 = sbr.rel (0) target = $region21
    $region20: #{encoder_block.5} parent=1 // pred_region
      %s20 = scalar_lea.vmem %s4, 4
      // Predicated region
      $region22: #{encoder_block.5} parent=20 // pred_check
        _
      $region23: #{encoder_block.5} parent=20 // pred_check_branch
        %22 = sbr.rel (0) target = $region25
      $region24: #{encoder_block.5} parent=20 // pred_region
        // Predicated region
        $region26: #{encoder_block.5} parent=24 // pred_check
          _
        $region27: #{encoder_block.5} parent=24 // pred_check_branch
          %24 = sbr.rel target = $region29
        $region28: #{encoder_block.5} parent=24 // pred_region
          // Predicated region
          $region41: #{encoder_block.5} parent=28 // pred_check
            _
          $region42: #{encoder_block.5} parent=28 // pred_check_branch
            %70 = sbr.rel (0) target = $region44
          $region43: #{encoder_block.5} parent=28 // pred_region
            loop: start=0, step=1, limit=1
            $region45: #{encoder_block.5} parent=43 // loop_pre_header
              _
            $region46: #{encoder_block.5} parent=43 // loop_header
              %s72 = sphi 0, %s76
              %p73 = scmp.ge.s32.totalorder %s72, 1
              %s77 = sphi %s20, %s20
              %s78 = sphi [#allocation2], [#allocation2]
            $region47: #{encoder_block.5} parent=43 // loop_header_branch
              %75 = sbr.rel (%p73) target = $region51
            $region48: #{encoder_block.5} parent=43 // loop_body
              _
            $region49: #{encoder_block.5} parent=43 // loop_footer
              %s76 = sadd.s32 1, %s72
            $region50: #{encoder_block.5} parent=43 // loop_footer_branch
              %71 = sbr.rel target = $region46
            $region51: #{encoder_block.5} parent=43 // loop_exit
              _
            %s80 = ssub.s32 16, 1
            loop: start=0, step=1, limit=1
            $region52: #{encoder_block.5} parent=43 // loop_pre_header
              _
            $region53: #{encoder_block.5} parent=43 // loop_header
              %s82 = sphi 0, %s86
              %p83 = scmp.ge.s32.totalorder %s82, 1
              %s87 = sphi %s20, %s20
              %s88 = sphi [#allocation2], [#allocation2]
            $region54: #{encoder_block.5} parent=43 // loop_header_branch
              %85 = sbr.rel (%p83) target = $region58
            $region55: #{encoder_block.5} parent=43 // loop_body
              %v89 = vld [vmem:[%s87] sm:%s80]
              %90 = vst [vmem:[%s88] sm:%s80] %v89
              %v91 = vld [vmem:[%s87 + $0x8] sm:%s80]
              %92 = vst [vmem:[%s88 + $0x4] sm:%s80] %v91
              %v93 = vld [vmem:[%s87 + $0x10] sm:%s80]
              %94 = vst [vmem:[%s88 + $0x8] sm:%s80] %v93
              %v95 = vld [vmem:[%s87 + $0x18] sm:%s80]
              %96 = vst [vmem:[%s88 + $0xc] sm:%s80] %v95
              %v97 = vld [vmem:[%s87 + $0x20] sm:%s80]
              %98 = vst [vmem:[%s88 + $0x10] sm:%s80] %v97
              %v99 = vld [vmem:[%s87 + $0x28] sm:%s80]
              %100 = vst [vmem:[%s88 + $0x14] sm:%s80] %v99
              %v101 = vld [vmem:[%s87 + $0x30] sm:%s80]
              %102 = vst [vmem:[%s88 + $0x18] sm:%s80] %v101
              %v103 = vld [vmem:[%s87 + $0x38] sm:%s80]
              %104 = vst [vmem:[%s88 + $0x1c] sm:%s80] %v103
              %v105 = vld [vmem:[%s87 + $0x40] sm:%s80]
              %106 = vst [vmem:[%s88 + $0x20] sm:%s80] %v105
              %v107 = vld [vmem:[%s87 + $0x48] sm:%s80]
              %108 = vst [vmem:[%s88 + $0x24] sm:%s80] %v107
              %v109 = vld [vmem:[%s87 + $0x50] sm:%s80]
              %110 = vst [vmem:[%s88 + $0x28] sm:%s80] %v109
              %v111 = vld [vmem:[%s87 + $0x58] sm:%s80]
              %112 = vst [vmem:[%s88 + $0x2c] sm:%s80] %v111
              %v113 = vld [vmem:[%s87 + $0x60] sm:%s80]
              %114 = vst [vmem:[%s88 + $0x30] sm:%s80] %v113
              %v115 = vld [vmem:[%s87 + $0x68] sm:%s80]
              %116 = vst [vmem:[%s88 + $0x34] sm:%s80] %v115
              %v117 = vld [vmem:[%s87 + $0x70] sm:%s80]
              %118 = vst [vmem:[%s88 + $0x38] sm:%s80] %v117
              %v119 = vld [vmem:[%s87 + $0x78] sm:%s80]
              %120 = vst [vmem:[%s88 + $0x3c] sm:%s80] %v119
            $region56: #{encoder_block.5} parent=43 // loop_footer
              %s86 = sadd.s32 1, %s82
            $region57: #{encoder_block.5} parent=43 // loop_footer_branch
              %81 = sbr.rel target = $region53
            $region58: #{encoder_block.5} parent=43 // loop_exit
              _
          $region44: #{encoder_block.5} parent=28 // pred_fallthru
            _
        $region29: #{encoder_block.5} parent=24 // pred_fallthru
          _
        // Predicated region
        $region30: #{encoder_block.5} parent=24 // pred_check
          _
        $region31: #{encoder_block.5} parent=24 // pred_check_branch
          %26 = sbr.rel (0) target = $region33
        $region32: #{encoder_block.5} parent=24 // pred_region
          %s28 = ssub.s32 16, 1
          loop: start=0, step=1, limit=1
          $region34: #{encoder_block.5} parent=32 // loop_pre_header
            _
          $region35: #{encoder_block.5} parent=32 // loop_header
            %s30 = sphi 0, %s34
            %p31 = scmp.ge.s32.totalorder %s30, 1
            %s35 = sphi %s20, %s20
            %s36 = sphi [#allocation2], [#allocation2]
          $region36: #{encoder_block.5} parent=32 // loop_header_branch
            %33 = sbr.rel (%p31) target = $region40
          $region37: #{encoder_block.5} parent=32 // loop_body
            %v37 = vld [vmem:[%s35] sm:%s28]
            %38 = vst [vmem:[%s36] sm:%s28] %v37
            %v39 = vld [vmem:[%s35 + $0x8] sm:%s28]
            %40 = vst [vmem:[%s36 + $0x4] sm:%s28] %v39
            %v41 = vld [vmem:[%s35 + $0x10] sm:%s28]
            %42 = vst [vmem:[%s36 + $0x8] sm:%s28] %v41
            %v43 = vld [vmem:[%s35 + $0x18] sm:%s28]
            %44 = vst [vmem:[%s36 + $0xc] sm:%s28] %v43
            %v45 = vld [vmem:[%s35 + $0x20] sm:%s28]
            %46 = vst [vmem:[%s36 + $0x10] sm:%s28] %v45
            %v47 = vld [vmem:[%s35 + $0x28] sm:%s28]
            %48 = vst [vmem:[%s36 + $0x14] sm:%s28] %v47
            %v49 = vld [vmem:[%s35 + $0x30] sm:%s28]
            %50 = vst [vmem:[%s36 + $0x18] sm:%s28] %v49
            %v51 = vld [vmem:[%s35 + $0x38] sm:%s28]
            %52 = vst [vmem:[%s36 + $0x1c] sm:%s28] %v51
            %v53 = vld [vmem:[%s35 + $0x40] sm:%s28]
            %54 = vst [vmem:[%s36 + $0x20] sm:%s28] %v53
            %v55 = vld [vmem:[%s35 + $0x48] sm:%s28]
            %56 = vst [vmem:[%s36 + $0x24] sm:%s28] %v55
            %v57 = vld [vmem:[%s35 + $0x50] sm:%s28]
            %58 = vst [vmem:[%s36 + $0x28] sm:%s28] %v57
            %v59 = vld [vmem:[%s35 + $0x58] sm:%s28]
            %60 = vst [vmem:[%s36 + $0x2c] sm:%s28] %v59
            %v61 = vld [vmem:[%s35 + $0x60] sm:%s28]
            %62 = vst [vmem:[%s36 + $0x30] sm:%s28] %v61
            %v63 = vld [vmem:[%s35 + $0x68] sm:%s28]
            %64 = vst [vmem:[%s36 + $0x34] sm:%s28] %v63
            %v65 = vld [vmem:[%s35 + $0x70] sm:%s28]
            %66 = vst [vmem:[%s36 + $0x38] sm:%s28] %v65
            %v67 = vld [vmem:[%s35 + $0x78] sm:%s28]
            %68 = vst [vmem:[%s36 + $0x3c] sm:%s28] %v67
          $region38: #{encoder_block.5} parent=32 // loop_footer
            %s34 = sadd.s32 1, %s30
          $region39: #{encoder_block.5} parent=32 // loop_footer_branch
            %29 = sbr.rel target = $region35
          $region40: #{encoder_block.5} parent=32 // loop_exit
            _
        $region33: #{encoder_block.5} parent=24 // pred_fallthru
          _
      $region25: #{encoder_block.5} parent=20 // pred_fallthru
        _
      %121 = vnop
    $region21: #{encoder_block.5} parent=1 // pred_fallthru
      _
    // Predicated region
    $region59: #{encoder_block.5} parent=1 // pred_check
      _
    $region60: #{encoder_block.5} parent=1 // pred_check_branch
      %123 = sbr.rel (0) target = $region62
    $region61: #{encoder_block.5} parent=1 // pred_region
      _
    $region62: #{encoder_block.5} parent=1 // pred_fallthru
      _
    %v125 = vld [vmem:[%s0] sm:$0xf]
    %v126 = vld [vmem:[%s0 + $0x4] sm:$0xf]
    %v127 = vld [vmem:[%s0 + $0x8] sm:$0xf]
    %v128 = vld [vmem:[%s0 + $0xc] sm:$0xf]
    %v129 = vld [vmem:[%s0 + $0x10] sm:$0xf]
    %v130 = vld [vmem:[%s0 + $0x14] sm:$0xf]
    %v131 = vld [vmem:[%s0 + $0x18] sm:$0xf]
    %v132 = vld [vmem:[%s0 + $0x1c] sm:$0xf]
    %v133 = vld [vmem:[%s0 + $0x20] sm:$0xf]
    %v134 = vld [vmem:[%s0 + $0x24] sm:$0xf]
    %v135 = vld [vmem:[%s0 + $0x28] sm:$0xf]
    %v136 = vld [vmem:[%s0 + $0x2c] sm:$0xf]
    %v137 = vld [vmem:[%s0 + $0x30] sm:$0xf]
    %v138 = vld [vmem:[%s0 + $0x34] sm:$0xf]
    %v139 = vld [vmem:[%s0 + $0x38] sm:$0xf]
    %v140 = vld [vmem:[%s0 + $0x3c] sm:$0xf]
    %v141 = vld [vmem:[%s1] sm:$0xf]
    %v142 = vld [vmem:[%s1 + $0x4] sm:$0xf]
    %v143 = vld [vmem:[%s1 + $0x8] sm:$0xf]
    %v144 = vld [vmem:[%s1 + $0xc] sm:$0xf]
    %v145 = vld [vmem:[%s1 + $0x10] sm:$0xf]
    %v146 = vld [vmem:[%s1 + $0x14] sm:$0xf]
    %v147 = vld [vmem:[%s1 + $0x18] sm:$0xf]
    %v148 = vld [vmem:[%s1 + $0x1c] sm:$0xf]
    %v149 = vld [vmem:[%s1 + $0x20] sm:$0xf]
    %v150 = vld [vmem:[%s1 + $0x24] sm:$0xf]
    %v167 = vunpack.c.l.b16 %v125
    %v168 = vunpack.c.l.b16 %v126
    %v169 = vunpack.c.l.b16 %v127
    %v170 = vunpack.c.l.b16 %v128
    %v171 = vunpack.c.l.b16 %v129
    %v172 = vunpack.c.l.b16 %v130
    %v173 = vunpack.c.l.b16 %v131
    %v174 = vunpack.c.l.b16 %v132
    %v175 = vunpack.c.l.b16 %v133
    %v176 = vunpack.c.l.b16 %v134
    %v177 = vunpack.c.l.b16 %v135
    %v178 = vunpack.c.l.b16 %v136
    %v179 = vunpack.c.l.b16 %v137
    %v180 = vunpack.c.l.b16 %v138
    %v181 = vunpack.c.l.b16 %v139
    %v182 = vunpack.c.l.b16 %v140
    %v183 = vpack.c.b16 %v168, %v167
    %v184 = vpack.c.b16 %v170, %v169
    %v185 = vpack.c.b16 %v172, %v171
    %v186 = vpack.c.b16 %v174, %v173
    %v187 = vpack.c.b16 %v176, %v175
    %v188 = vpack.c.b16 %v178, %v177
    %v189 = vpack.c.b16 %v180, %v179
    %v190 = vpack.c.b16 %v182, %v181
    %v201 = vunpack.c.l.b16 %v141
    %v202 = vunpack.c.l.b16 %v142
    %v203 = vunpack.c.l.b16 %v143
    %v204 = vunpack.c.l.b16 %v144
    %v205 = vunpack.c.l.b16 %v145
    %v206 = vunpack.c.l.b16 %v146
    %v207 = vunpack.c.l.b16 %v147
    %v208 = vunpack.c.l.b16 %v148
    %v209 = vunpack.c.l.b16 %v149
    %v210 = vunpack.c.l.b16 %v150
    %v211 = vpack.c.b16 %v202, %v201
    %v212 = vpack.c.b16 %v204, %v203
    %v213 = vpack.c.b16 %v206, %v205
    %v214 = vpack.c.b16 %v208, %v207
    %v215 = vpack.c.b16 %v210, %v209
    %vm221 = vcmask 654336
    %v223 = vsel %vm221, %v183, 0
    %v226 = vsel %vm221, %v184, 0
    %v229 = vsel %vm221, %v185, 0
    %v232 = vsel %vm221, %v186, 0
    %v235 = vsel %vm221, %v187, 0
    %v238 = vsel %vm221, %v188, 0
    %v241 = vsel %vm221, %v189, 0
    %v244 = vsel %vm221, %v190, 0
    %246 = vmatpush.bf16.msra.mxu0 0
    %247 = vmatpush.bf16.msra.mxu0 0
    %248 = vmatpush.bf16.msra.mxu0 0
    %249 = vmatpush.bf16.msra.mxu0 %v215
    %250 = vmatpush.bf16.msra.mxu0 %v214
    %251 = vmatpush.bf16.msra.mxu0 %v213
    %252 = vmatpush.bf16.msra.mxu0 %v212
    %253 = vmatpush.bf16.msra.mxu0 %v211
    %254 = vmatmul.bf16.gmra.mxu0 %v223
    %v255 = vpop.f32.mrf.mxu0
    %v256 = vadd.f32 0.0, %v255
    %v257 = vpop.f32.mrf.mxu0
    %v258 = vadd.f32 0.0, %v257
    %259 = vmatmul.bf16.gmra.mxu0 %v226
    %v260 = vpop.f32.mrf.mxu0
    %v261 = vadd.f32 0.0, %v260
    %v262 = vpop.f32.mrf.mxu0
    %v263 = vadd.f32 0.0, %v262
    %264 = vmatmul.bf16.gmra.mxu0 %v229
    %v265 = vpop.f32.mrf.mxu0
    %v266 = vadd.f32 0.0, %v265
    %v267 = vpop.f32.mrf.mxu0
    %v268 = vadd.f32 0.0, %v267
    %269 = vmatmul.bf16.gmra.mxu0 %v232
    %v270 = vpop.f32.mrf.mxu0
    %v271 = vadd.f32 0.0, %v270
    %v272 = vpop.f32.mrf.mxu0
    %v273 = vadd.f32 0.0, %v272
    %274 = vmatmul.bf16.gmra.mxu0 %v235
    %v275 = vpop.f32.mrf.mxu0
    %v276 = vadd.f32 0.0, %v275
    %v277 = vpop.f32.mrf.mxu0
    %v278 = vadd.f32 0.0, %v277
    %279 = vmatmul.bf16.gmra.mxu0 %v238
    %v280 = vpop.f32.mrf.mxu0
    %v281 = vadd.f32 0.0, %v280
    %v282 = vpop.f32.mrf.mxu0
    %v283 = vadd.f32 0.0, %v282
    %284 = vmatmul.bf16.gmra.mxu0 %v241
    %v285 = vpop.f32.mrf.mxu0
    %v286 = vadd.f32 0.0, %v285
    %v287 = vpop.f32.mrf.mxu0
    %v288 = vadd.f32 0.0, %v287
    %289 = vmatmul.bf16.gmra.mxu0 %v244
    %v290 = vpop.f32.mrf.mxu0
    %v291 = vadd.f32 0.0, %v290
    %v292 = vpop.f32.mrf.mxu0
    %v293 = vadd.f32 0.0, %v292
    %294 = vdwg.mxu0
    %v295 = vld [vmem:[%s2] sm:$0x1]
    %v296 = vld [vmem:[%s3] sm:$0x1]
    %v297 = vadd.f32 %v256, %v258
    %v298 = vadd.f32 %v297, %v261
    %v299 = vadd.f32 %v298, %v263
    %v300 = vadd.f32 %v299, %v266
    %v301 = vadd.f32 %v300, %v268
    %v302 = vadd.f32 %v301, %v271
    %v303 = vadd.f32 %v302, %v273
    %v304 = vadd.f32 %v303, %v276
    %v305 = vadd.f32 %v304, %v278
    %v306 = vadd.f32 %v305, %v281
    %v307 = vadd.f32 %v306, %v283
    %v308 = vadd.f32 %v307, %v286
    %v309 = vadd.f32 %v308, %v288
    %v310 = vadd.f32 %v309, %v291
    %v311 = vadd.f32 %v310, %v293
    %v312 = vrot.slane %v311, 4
    %v313 = vadd.f32 %v311, %v312
    %v314 = vrot.slane %v313, 2
    %v315 = vadd.f32 %v313, %v314
    %v316 = vrot.slane %v315, 1
    %v317 = vadd.f32 %v315, %v316
    %v318 = vmul.f32 %v317, 0.0078125
    %v319 = vmul.f32 %v256, %v256
    %v320 = vmul.f32 %v258, %v258
    %v321 = vmul.f32 %v261, %v261
    %v322 = vmul.f32 %v263, %v263
    %v323 = vmul.f32 %v266, %v266
    %v324 = vmul.f32 %v268, %v268
    %v325 = vmul.f32 %v271, %v271
    %v326 = vmul.f32 %v273, %v273
    %v327 = vmul.f32 %v276, %v276
    %v328 = vmul.f32 %v278, %v278
    %v329 = vmul.f32 %v281, %v281
    %v330 = vmul.f32 %v283, %v283
    %v331 = vmul.f32 %v286, %v286
    %v332 = vmul.f32 %v288, %v288
    %v333 = vmul.f32 %v291, %v291
    %v334 = vmul.f32 %v293, %v293
    %v335 = vadd.f32 %v319, %v320
    %v336 = vadd.f32 %v335, %v321
    %v337 = vadd.f32 %v336, %v322
    %v338 = vadd.f32 %v337, %v323
    %v339 = vadd.f32 %v338, %v324
    %v340 = vadd.f32 %v339, %v325
    %v341 = vadd.f32 %v340, %v326
    %v342 = vadd.f32 %v341, %v327
    %v343 = vadd.f32 %v342, %v328
    %v344 = vadd.f32 %v343, %v329
    %v345 = vadd.f32 %v344, %v330
    %v346 = vadd.f32 %v345, %v331
    %v347 = vadd.f32 %v346, %v332
    %v348 = vadd.f32 %v347, %v333
    %v349 = vadd.f32 %v348, %v334
    %v350 = vrot.slane %v349, 4
    %v351 = vadd.f32 %v349, %v350
    %v352 = vrot.slane %v351, 2
    %v353 = vadd.f32 %v351, %v352
    %v354 = vrot.slane %v353, 1
    %v355 = vadd.f32 %v353, %v354
    %v356 = vmul.f32 %v355, 0.0078125
    %v357 = vmul.f32 %v318, %v318
    %v358 = vsub.f32 %v356, %v357
    %v359 = vmax.f32 %v358, 0.0
    %v360 = vadd.f32 %v359, 1e-05
    %v361 = vrsqrt.pop %v360
    %v362 = vmul.f32 %v361, %v360
    %v363 = vmul.f32 %v362, %v361
    %v364 = vmul.f32 0.5, %v363
    %v365 = vsub.f32 1.5, %v364
    %v366 = vmul.f32 %v361, %v365
    %vm367 = vweird.f32 %v360
    %vm368 = vweird.f32 %v361
    %vm369 = vmor %vm367, %vm368
    %v370 = vsel %vm369, %v361, %v366
    %v371 = vmul.f32 %v295, %v370
    %v372 = vmul.f32 %v318, %v371
    %v373 = vsub.f32 %v296, %v372
    %v375 = vperm.slane %v371, 0
    %v377 = vmul.f32 %v256, %v375
    %v378 = vmul.f32 %v258, %v375
    %v379 = vmul.f32 %v261, %v375
    %v380 = vmul.f32 %v263, %v375
    %v381 = vmul.f32 %v266, %v375
    %v382 = vmul.f32 %v268, %v375
    %v383 = vmul.f32 %v271, %v375
    %v384 = vmul.f32 %v273, %v375
    %v385 = vmul.f32 %v276, %v375
    %v386 = vmul.f32 %v278, %v375
    %v387 = vmul.f32 %v281, %v375
    %v388 = vmul.f32 %v283, %v375
    %v389 = vmul.f32 %v286, %v375
    %v390 = vmul.f32 %v288, %v375
    %v391 = vmul.f32 %v291, %v375
    %v392 = vmul.f32 %v293, %v375
    %v394 = vperm.slane %v373, 0
    %v396 = vadd.f32 %v377, %v394
    %v397 = vadd.f32 %v378, %v394
    %v398 = vadd.f32 %v379, %v394
    %v399 = vadd.f32 %v380, %v394
    %v400 = vadd.f32 %v381, %v394
    %v401 = vadd.f32 %v382, %v394
    %v402 = vadd.f32 %v383, %v394
    %v403 = vadd.f32 %v384, %v394
    %v404 = vadd.f32 %v385, %v394
    %v405 = vadd.f32 %v386, %v394
    %v406 = vadd.f32 %v387, %v394
    %v407 = vadd.f32 %v388, %v394
    %v408 = vadd.f32 %v389, %v394
    %v409 = vadd.f32 %v390, %v394
    %v410 = vadd.f32 %v391, %v394
    %v411 = vadd.f32 %v392, %v394
    %v412 = vmax.f32 %v396, 0.0
    %v413 = vmax.f32 %v397, 0.0
    %v414 = vmax.f32 %v398, 0.0
    %v415 = vmax.f32 %v399, 0.0
    %v416 = vmax.f32 %v400, 0.0
    %v417 = vmax.f32 %v401, 0.0
    %v418 = vmax.f32 %v402, 0.0
    %v419 = vmax.f32 %v403, 0.0
    %v420 = vmax.f32 %v404, 0.0
    %v421 = vmax.f32 %v405, 0.0
    %v422 = vmax.f32 %v406, 0.0
    %v423 = vmax.f32 %v407, 0.0
    %v424 = vmax.f32 %v408, 0.0
    %v425 = vmax.f32 %v409, 0.0
    %v426 = vmax.f32 %v410, 0.0
    %v427 = vmax.f32 %v411, 0.0
    %v428 = vld [vmem:[#allocation2] sm:$0xf]
    %v429 = vld [vmem:[#allocation2 + $0x4] sm:$0xf]
    %v430 = vld [vmem:[#allocation2 + $0x8] sm:$0xf]
    %v431 = vld [vmem:[#allocation2 + $0xc] sm:$0xf]
    %v432 = vld [vmem:[#allocation2 + $0x10] sm:$0xf]
    %v433 = vld [vmem:[#allocation2 + $0x14] sm:$0xf]
    %v434 = vld [vmem:[#allocation2 + $0x18] sm:$0xf]
    %v435 = vld [vmem:[#allocation2 + $0x1c] sm:$0xf]
    %v436 = vld [vmem:[#allocation2 + $0x20] sm:$0xf]
    %v437 = vld [vmem:[#allocation2 + $0x24] sm:$0xf]
    %v438 = vld [vmem:[#allocation2 + $0x28] sm:$0xf]
    %v439 = vld [vmem:[#allocation2 + $0x2c] sm:$0xf]
    %v440 = vld [vmem:[#allocation2 + $0x30] sm:$0xf]
    %v441 = vld [vmem:[#allocation2 + $0x34] sm:$0xf]
    %v442 = vld [vmem:[#allocation2 + $0x38] sm:$0xf]
    %v443 = vld [vmem:[#allocation2 + $0x3c] sm:$0xf]
    %v444 = vunpack.c.l.bf16 %v428
    %v445 = vunpack.c.l.bf16 %v429
    %v446 = vunpack.c.l.bf16 %v430
    %v447 = vunpack.c.l.bf16 %v431
    %v448 = vunpack.c.l.bf16 %v432
    %v449 = vunpack.c.l.bf16 %v433
    %v450 = vunpack.c.l.bf16 %v434
    %v451 = vunpack.c.l.bf16 %v435
    %v452 = vunpack.c.l.bf16 %v436
    %v453 = vunpack.c.l.bf16 %v437
    %v454 = vunpack.c.l.bf16 %v438
    %v455 = vunpack.c.l.bf16 %v439
    %v456 = vunpack.c.l.bf16 %v440
    %v457 = vunpack.c.l.bf16 %v441
    %v458 = vunpack.c.l.bf16 %v442
    %v459 = vunpack.c.l.bf16 %v443
    %v460 = vadd.f32 %v412, %v444
    %v461 = vadd.f32 %v413, %v445
    %v462 = vadd.f32 %v414, %v446
    %v463 = vadd.f32 %v415, %v447
    %v464 = vadd.f32 %v416, %v448
    %v465 = vadd.f32 %v417, %v449
    %v466 = vadd.f32 %v418, %v450
    %v467 = vadd.f32 %v419, %v451
    %v468 = vadd.f32 %v420, %v452
    %v469 = vadd.f32 %v421, %v453
    %v470 = vadd.f32 %v422, %v454
    %v471 = vadd.f32 %v423, %v455
    %v472 = vadd.f32 %v424, %v456
    %v473 = vadd.f32 %v425, %v457
    %v474 = vadd.f32 %v426, %v458
    %v475 = vadd.f32 %v427, %v459
    %v476 = vpack.c.bf16 %v460, %v460
    %v477 = vpack.c.bf16 %v461, %v461
    %v478 = vpack.c.bf16 %v462, %v462
    %v479 = vpack.c.bf16 %v463, %v463
    %v480 = vpack.c.bf16 %v464, %v464
    %v481 = vpack.c.bf16 %v465, %v465
    %v482 = vpack.c.bf16 %v466, %v466
    %v483 = vpack.c.bf16 %v467, %v467
    %v484 = vpack.c.bf16 %v468, %v468
    %v485 = vpack.c.bf16 %v469, %v469
    %v486 = vpack.c.bf16 %v470, %v470
    %v487 = vpack.c.bf16 %v471, %v471
    %v488 = vpack.c.bf16 %v472, %v472
    %v489 = vpack.c.bf16 %v473, %v473
    %v490 = vpack.c.bf16 %v474, %v474
    %v491 = vpack.c.bf16 %v475, %v475
    %492 = vst [vmem:[%s5] sm:$0xf] %v476
    %493 = vst [vmem:[%s5 + $0x4] sm:$0xf] %v477
    %494 = vst [vmem:[%s5 + $0x8] sm:$0xf] %v478
    %495 = vst [vmem:[%s5 + $0xc] sm:$0xf] %v479
    %496 = vst [vmem:[%s5 + $0x10] sm:$0xf] %v480
    %497 = vst [vmem:[%s5 + $0x14] sm:$0xf] %v481
    %498 = vst [vmem:[%s5 + $0x18] sm:$0xf] %v482
    %499 = vst [vmem:[%s5 + $0x1c] sm:$0xf] %v483
    %500 = vst [vmem:[%s5 + $0x20] sm:$0xf] %v484
    %501 = vst [vmem:[%s5 + $0x24] sm:$0xf] %v485
    %502 = vst [vmem:[%s5 + $0x28] sm:$0xf] %v486
    %503 = vst [vmem:[%s5 + $0x2c] sm:$0xf] %v487
    %504 = vst [vmem:[%s5 + $0x30] sm:$0xf] %v488
    %505 = vst [vmem:[%s5 + $0x34] sm:$0xf] %v489
    %506 = vst [vmem:[%s5 + $0x38] sm:$0xf] %v490
    %507 = vst [vmem:[%s5 + $0x3c] sm:$0xf] %v491
    // Predicated region
    $region63: #{encoder_block.5} parent=1 // pred_check
      _
    $region64: #{encoder_block.5} parent=1 // pred_check_branch
      %509 = sbr.rel (0) target = $region66
    $region65: #{encoder_block.5} parent=1 // pred_region
      _
    $region66: #{encoder_block.5} parent=1 // pred_fallthru
      _
    // Predicated region
    $region67: #{encoder_block.5} parent=1 // pred_check
      _
    $region68: #{encoder_block.5} parent=1 // pred_check_branch
      %511 = sbr.rel (0) target = $region70
    $region69: #{encoder_block.5} parent=1 // pred_region
      _
    $region70: #{encoder_block.5} parent=1 // pred_fallthru
      _

// kernel: encoder_block.7
$region0: #{encoder_block.7}
  #allocation0 [shape = 'u32[]', space=smem, size = 0x4, offset = 0x4, fixed_abs, tag = 'smem constant byte address 0x4 - core index']
  #allocation1 [shape = 'u32[72,128]{1,0:T(1,128)}', space=vmem, size = 0x9000, scoped, tag = 'internal scratch']
  %s0 = inlined_call_operand.vmem [shape: bf16[128,80], index: 0, kind: input, shape index: {}]
  %s1 = inlined_call_operand.vmem [shape: bf16[80,128], index: 1, kind: input, shape index: {}]
  %s2 = inlined_call_operand.vmem [shape: f32[1,128], index: 2, kind: input, shape index: {}]
  %s3 = inlined_call_operand.vmem [shape: f32[1,128], index: 3, kind: input, shape index: {}]
  %s4 = inlined_call_operand.vmem [shape: bf16[128,128], index: 4, kind: input, shape index: {}]
  %s5 = inlined_call_operand.vmem [shape: bf16[128,128], index: 5, kind: output, shape index: {}]
  %s6 = sld [smem:[#allocation0]]
  $region30: #{encoder_block.7} parent=0
    _
  %s8 = ssub.s32 1, %s6
  %s9 = scalar_select 0, %s8, %s6
  // Predicated region
  $region2: #{encoder_block.7} parent=0 // pred_check
    _
  $region3: #{encoder_block.7} parent=0 // pred_check_branch
    %11 = sbr.rel (0) target = $region5
  $region4: #{encoder_block.7} parent=0 // pred_region
    _
  $region5: #{encoder_block.7} parent=0 // pred_fallthru
    _
  // Predicated region
  $region6: #{encoder_block.7} parent=0 // pred_check
    _
  $region7: #{encoder_block.7} parent=0 // pred_check_branch
    %13 = sbr.rel (0) target = $region9
  $region8: #{encoder_block.7} parent=0 // pred_region
    _
  $region9: #{encoder_block.7} parent=0 // pred_fallthru
    _
  // Predicated region
  $region10: #{encoder_block.7} parent=0 // pred_check
    _
  $region11: #{encoder_block.7} parent=0 // pred_check_branch
    %15 = sbr.rel (0) target = $region13
  $region12: #{encoder_block.7} parent=0 // pred_region
    _
  $region13: #{encoder_block.7} parent=0 // pred_fallthru
    _
  // Predicated region
  $region14: #{encoder_block.7} parent=0 // pred_check
    _
  $region15: #{encoder_block.7} parent=0 // pred_check_branch
    %17 = sbr.rel (0) target = $region17
  $region16: #{encoder_block.7} parent=0 // pred_region
    _
  $region17: #{encoder_block.7} parent=0 // pred_fallthru
    _
  // Predicated region
  $region18: #{encoder_block.7} parent=0 // pred_check
    _
  $region19: #{encoder_block.7} parent=0 // pred_check_branch
    %19 = sbr.rel (0) target = $region21
  $region20: #{encoder_block.7} parent=0 // pred_region
    _
  $region21: #{encoder_block.7} parent=0 // pred_fallthru
    _
  %v21 = vld [vmem:[%s0] sm:$0xf]
  %v22 = vld [vmem:[%s0 + $0x4] sm:$0xf]
  %v23 = vld [vmem:[%s0 + $0x8] sm:$0xf]
  %v24 = vld [vmem:[%s0 + $0xc] sm:$0xf]
  %v25 = vld [vmem:[%s0 + $0x10] sm:$0xf]
  %v26 = vld [vmem:[%s0 + $0x14] sm:$0xf]
  %v27 = vld [vmem:[%s0 + $0x18] sm:$0xf]
  %v28 = vld [vmem:[%s0 + $0x1c] sm:$0xf]
  %v29 = vld [vmem:[%s0 + $0x20] sm:$0xf]
  %v30 = vld [vmem:[%s0 + $0x24] sm:$0xf]
  %v31 = vld [vmem:[%s0 + $0x28] sm:$0xf]
  %v32 = vld [vmem:[%s0 + $0x2c] sm:$0xf]
  %v33 = vld [vmem:[%s0 + $0x30] sm:$0xf]
  %v34 = vld [vmem:[%s0 + $0x34] sm:$0xf]
  %v35 = vld [vmem:[%s0 + $0x38] sm:$0xf]
  %v36 = vld [vmem:[%s0 + $0x3c] sm:$0xf]
  %v37 = vld [vmem:[%s1] sm:$0xf]
  %v38 = vld [vmem:[%s1 + $0x4] sm:$0xf]
  %v39 = vld [vmem:[%s1 + $0x8] sm:$0xf]
  %v40 = vld [vmem:[%s1 + $0xc] sm:$0xf]
  %v41 = vld [vmem:[%s1 + $0x10] sm:$0xf]
  %v42 = vld [vmem:[%s1 + $0x14] sm:$0xf]
  %v43 = vld [vmem:[%s1 + $0x18] sm:$0xf]
  %v44 = vld [vmem:[%s1 + $0x1c] sm:$0xf]
  %v45 = vld [vmem:[%s1 + $0x20] sm:$0xf]
  %v46 = vld [vmem:[%s1 + $0x24] sm:$0xf]
  %v63 = vunpack.c.l.b16 %v21
  %v64 = vunpack.c.l.b16 %v22
  %v65 = vunpack.c.l.b16 %v23
  %v66 = vunpack.c.l.b16 %v24
  %v67 = vunpack.c.l.b16 %v25
  %v68 = vunpack.c.l.b16 %v26
  %v69 = vunpack.c.l.b16 %v27
  %v70 = vunpack.c.l.b16 %v28
  %v71 = vunpack.c.l.b16 %v29
  %v72 = vunpack.c.l.b16 %v30
  %v73 = vunpack.c.l.b16 %v31
  %v74 = vunpack.c.l.b16 %v32
  %v75 = vunpack.c.l.b16 %v33
  %v76 = vunpack.c.l.b16 %v34
  %v77 = vunpack.c.l.b16 %v35
  %v78 = vunpack.c.l.b16 %v36
  %v79 = vpack.c.b16 %v64, %v63
  %v80 = vpack.c.b16 %v66, %v65
  %v81 = vpack.c.b16 %v68, %v67
  %v82 = vpack.c.b16 %v70, %v69
  %v83 = vpack.c.b16 %v72, %v71
  %v84 = vpack.c.b16 %v74, %v73
  %v85 = vpack.c.b16 %v76, %v75
  %v86 = vpack.c.b16 %v78, %v77
  %v97 = vunpack.c.l.b16 %v37
  %v98 = vunpack.c.l.b16 %v38
  %v99 = vunpack.c.l.b16 %v39
  %v100 = vunpack.c.l.b16 %v40
  %v101 = vunpack.c.l.b16 %v41
  %v102 = vunpack.c.l.b16 %v42
  %v103 = vunpack.c.l.b16 %v43
  %v104 = vunpack.c.l.b16 %v44
  %v105 = vunpack.c.l.b16 %v45
  %v106 = vunpack.c.l.b16 %v46
  %v107 = vpack.c.b16 %v98, %v97
  %v108 = vpack.c.b16 %v100, %v99
  %v109 = vpack.c.b16 %v102, %v101
  %v110 = vpack.c.b16 %v104, %v103
  %v111 = vpack.c.b16 %v106, %v105
  %vm117 = vcmask 654336
  %v119 = vsel %vm117, %v79, 0
  %v122 = vsel %vm117, %v80, 0
  %v125 = vsel %vm117, %v81, 0
  %v128 = vsel %vm117, %v82, 0
  %v131 = vsel %vm117, %v83, 0
  %v134 = vsel %vm117, %v84, 0
  %v137 = vsel %vm117, %v85, 0
  %v140 = vsel %vm117, %v86, 0
  %142 = vmatpush.bf16.msra.mxu0 0
  %143 = vmatpush.bf16.msra.mxu0 0
  %144 = vmatpush.bf16.msra.mxu0 0
  %145 = vmatpush.bf16.msra.mxu0 %v111
  %146 = vmatpush.bf16.msra.mxu0 %v110
  %147 = vmatpush.bf16.msra.mxu0 %v109
  %148 = vmatpush.bf16.msra.mxu0 %v108
  %149 = vmatpush.bf16.msra.mxu0 %v107
  %150 = vmatmul.bf16.gmra.mxu0 %v119
  %v151 = vpop.f32.mrf.mxu0
  %v152 = vadd.f32 0.0, %v151
  %v153 = vpop.f32.mrf.mxu0
  %v154 = vadd.f32 0.0, %v153
  %155 = vmatmul.bf16.gmra.mxu0 %v122
  %v156 = vpop.f32.mrf.mxu0
  %v157 = vadd.f32 0.0, %v156
  %v158 = vpop.f32.mrf.mxu0
  %v159 = vadd.f32 0.0, %v158
  %160 = vmatmul.bf16.gmra.mxu0 %v125
  %v161 = vpop.f32.mrf.mxu0
  %v162 = vadd.f32 0.0, %v161
  %v163 = vpop.f32.mrf.mxu0
  %v164 = vadd.f32 0.0, %v163
  %165 = vmatmul.bf16.gmra.mxu0 %v128
  %v166 = vpop.f32.mrf.mxu0
  %v167 = vadd.f32 0.0, %v166
  %v168 = vpop.f32.mrf.mxu0
  %v169 = vadd.f32 0.0, %v168
  %170 = vmatmul.bf16.gmra.mxu0 %v131
  %v171 = vpop.f32.mrf.mxu0
  %v172 = vadd.f32 0.0, %v171
  %v173 = vpop.f32.mrf.mxu0
  %v174 = vadd.f32 0.0, %v173
  %175 = vmatmul.bf16.gmra.mxu0 %v134
  %v176 = vpop.f32.mrf.mxu0
  %v177 = vadd.f32 0.0, %v176
  %v178 = vpop.f32.mrf.mxu0
  %v179 = vadd.f32 0.0, %v178
  %180 = vmatmul.bf16.gmra.mxu0 %v137
  %v181 = vpop.f32.mrf.mxu0
  %v182 = vadd.f32 0.0, %v181
  %v183 = vpop.f32.mrf.mxu0
  %v184 = vadd.f32 0.0, %v183
  %185 = vmatmul.bf16.gmra.mxu0 %v140
  %v186 = vpop.f32.mrf.mxu0
  %v187 = vadd.f32 0.0, %v186
  %v188 = vpop.f32.mrf.mxu0
  %v189 = vadd.f32 0.0, %v188
  %190 = vdwg.mxu0
  %v191 = vld [vmem:[%s2] sm:$0x1]
  %v192 = vld [vmem:[%s3] sm:$0x1]
  %v193 = vadd.f32 %v152, %v154
  %v194 = vadd.f32 %v193, %v157
  %v195 = vadd.f32 %v194, %v159
  %v196 = vadd.f32 %v195, %v162
  %v197 = vadd.f32 %v196, %v164
  %v198 = vadd.f32 %v197, %v167
  %v199 = vadd.f32 %v198, %v169
  %v200 = vadd.f32 %v199, %v172
  %v201 = vadd.f32 %v200, %v174
  %v202 = vadd.f32 %v201, %v177
  %v203 = vadd.f32 %v202, %v179
  %v204 = vadd.f32 %v203, %v182
  %v205 = vadd.f32 %v204, %v184
  %v206 = vadd.f32 %v205, %v187
  %v207 = vadd.f32 %v206, %v189
  %v208 = vrot.slane %v207, 4
  %v209 = vadd.f32 %v207, %v208
  %v210 = vrot.slane %v209, 2
  %v211 = vadd.f32 %v209, %v210
  %v212 = vrot.slane %v211, 1
  %v213 = vadd.f32 %v211, %v212
  %v214 = vmul.f32 %v213, 0.0078125
  %v215 = vmul.f32 %v152, %v152
  %v216 = vmul.f32 %v154, %v154
  %v217 = vmul.f32 %v157, %v157
  %v218 = vmul.f32 %v159, %v159
  %v219 = vmul.f32 %v162, %v162
  %v220 = vmul.f32 %v164, %v164
  %v221 = vmul.f32 %v167, %v167
  %v222 = vmul.f32 %v169, %v169
  %v223 = vmul.f32 %v172, %v172
  %v224 = vmul.f32 %v174, %v174
  %v225 = vmul.f32 %v177, %v177
  %v226 = vmul.f32 %v179, %v179
  %v227 = vmul.f32 %v182, %v182
  %v228 = vmul.f32 %v184, %v184
  %v229 = vmul.f32 %v187, %v187
  %v230 = vmul.f32 %v189, %v189
  %v231 = vadd.f32 %v215, %v216
  %v232 = vadd.f32 %v231, %v217
  %v233 = vadd.f32 %v232, %v218
  %v234 = vadd.f32 %v233, %v219
  %v235 = vadd.f32 %v234, %v220
  %v236 = vadd.f32 %v235, %v221
  %v237 = vadd.f32 %v236, %v222
  %v238 = vadd.f32 %v237, %v223
  %v239 = vadd.f32 %v238, %v224
  %v240 = vadd.f32 %v239, %v225
  %v241 = vadd.f32 %v240, %v226
  %v242 = vadd.f32 %v241, %v227
  %v243 = vadd.f32 %v242, %v228
  %v244 = vadd.f32 %v243, %v229
  %v245 = vadd.f32 %v244, %v230
  %v246 = vrot.slane %v245, 4
  %v247 = vadd.f32 %v245, %v246
  %v248 = vrot.slane %v247, 2
  %v249 = vadd.f32 %v247, %v248
  %v250 = vrot.slane %v249, 1
  %v251 = vadd.f32 %v249, %v250
  %v252 = vmul.f32 %v251, 0.0078125
  %v253 = vmul.f32 %v214, %v214
  %v254 = vsub.f32 %v252, %v253
  %v255 = vmax.f32 %v254, 0.0
  %v256 = vadd.f32 %v255, 1e-05
  %v257 = vrsqrt.pop %v256
  %v258 = vmul.f32 %v257, %v256
  %v259 = vmul.f32 %v258, %v257
  %v260 = vmul.f32 0.5, %v259
  %v261 = vsub.f32 1.5, %v260
  %v262 = vmul.f32 %v257, %v261
  %vm263 = vweird.f32 %v256
  %vm264 = vweird.f32 %v257
  %vm265 = vmor %vm263, %vm264
  %v266 = vsel %vm265, %v257, %v262
  %v267 = vmul.f32 %v191, %v266
  %v268 = vmul.f32 %v214, %v267
  %v269 = vsub.f32 %v192, %v268
  %v271 = vperm.slane %v267, 0
  %v273 = vmul.f32 %v152, %v271
  %v274 = vmul.f32 %v154, %v271
  %v275 = vmul.f32 %v157, %v271
  %v276 = vmul.f32 %v159, %v271
  %v277 = vmul.f32 %v162, %v271
  %v278 = vmul.f32 %v164, %v271
  %v279 = vmul.f32 %v167, %v271
  %v280 = vmul.f32 %v169, %v271
  %v281 = vmul.f32 %v172, %v271
  %v282 = vmul.f32 %v174, %v271
  %v283 = vmul.f32 %v177, %v271
  %v284 = vmul.f32 %v179, %v271
  %v285 = vmul.f32 %v182, %v271
  %v286 = vmul.f32 %v184, %v271
  %v287 = vmul.f32 %v187, %v271
  %v288 = vmul.f32 %v189, %v271
  %v290 = vperm.slane %v269, 0
  %v292 = vadd.f32 %v273, %v290
  %v293 = vadd.f32 %v274, %v290
  %v294 = vadd.f32 %v275, %v290
  %v295 = vadd.f32 %v276, %v290
  %v296 = vadd.f32 %v277, %v290
  %v297 = vadd.f32 %v278, %v290
  %v298 = vadd.f32 %v279, %v290
  %v299 = vadd.f32 %v280, %v290
  %v300 = vadd.f32 %v281, %v290
  %v301 = vadd.f32 %v282, %v290
  %v302 = vadd.f32 %v283, %v290
  %v303 = vadd.f32 %v284, %v290
  %v304 = vadd.f32 %v285, %v290
  %v305 = vadd.f32 %v286, %v290
  %v306 = vadd.f32 %v287, %v290
  %v307 = vadd.f32 %v288, %v290
  %v308 = vmax.f32 %v292, 0.0
  %v309 = vmax.f32 %v293, 0.0
  %v310 = vmax.f32 %v294, 0.0
  %v311 = vmax.f32 %v295, 0.0
  %v312 = vmax.f32 %v296, 0.0
  %v313 = vmax.f32 %v297, 0.0
  %v314 = vmax.f32 %v298, 0.0
  %v315 = vmax.f32 %v299, 0.0
  %v316 = vmax.f32 %v300, 0.0
  %v317 = vmax.f32 %v301, 0.0
  %v318 = vmax.f32 %v302, 0.0
  %v319 = vmax.f32 %v303, 0.0
  %v320 = vmax.f32 %v304, 0.0
  %v321 = vmax.f32 %v305, 0.0
  %v322 = vmax.f32 %v306, 0.0
  %v323 = vmax.f32 %v307, 0.0
  %v324 = vld [vmem:[%s4] sm:$0xf]
  %v325 = vld [vmem:[%s4 + $0x4] sm:$0xf]
  %v326 = vld [vmem:[%s4 + $0x8] sm:$0xf]
  %v327 = vld [vmem:[%s4 + $0xc] sm:$0xf]
  %v328 = vld [vmem:[%s4 + $0x10] sm:$0xf]
  %v329 = vld [vmem:[%s4 + $0x14] sm:$0xf]
  %v330 = vld [vmem:[%s4 + $0x18] sm:$0xf]
  %v331 = vld [vmem:[%s4 + $0x1c] sm:$0xf]
  %v332 = vld [vmem:[%s4 + $0x20] sm:$0xf]
  %v333 = vld [vmem:[%s4 + $0x24] sm:$0xf]
  %v334 = vld [vmem:[%s4 + $0x28] sm:$0xf]
  %v335 = vld [vmem:[%s4 + $0x2c] sm:$0xf]
  %v336 = vld [vmem:[%s4 + $0x30] sm:$0xf]
  %v337 = vld [vmem:[%s4 + $0x34] sm:$0xf]
  %v338 = vld [vmem:[%s4 + $0x38] sm:$0xf]
  %v339 = vld [vmem:[%s4 + $0x3c] sm:$0xf]
  %v340 = vunpack.c.l.bf16 %v324
  %v341 = vunpack.c.l.bf16 %v325
  %v342 = vunpack.c.l.bf16 %v326
  %v343 = vunpack.c.l.bf16 %v327
  %v344 = vunpack.c.l.bf16 %v328
  %v345 = vunpack.c.l.bf16 %v329
  %v346 = vunpack.c.l.bf16 %v330
  %v347 = vunpack.c.l.bf16 %v331
  %v348 = vunpack.c.l.bf16 %v332
  %v349 = vunpack.c.l.bf16 %v333
  %v350 = vunpack.c.l.bf16 %v334
  %v351 = vunpack.c.l.bf16 %v335
  %v352 = vunpack.c.l.bf16 %v336
  %v353 = vunpack.c.l.bf16 %v337
  %v354 = vunpack.c.l.bf16 %v338
  %v355 = vunpack.c.l.bf16 %v339
  %v356 = vadd.f32 %v308, %v340
  %v357 = vadd.f32 %v309, %v341
  %v358 = vadd.f32 %v310, %v342
  %v359 = vadd.f32 %v311, %v343
  %v360 = vadd.f32 %v312, %v344
  %v361 = vadd.f32 %v313, %v345
  %v362 = vadd.f32 %v314, %v346
  %v363 = vadd.f32 %v315, %v347
  %v364 = vadd.f32 %v316, %v348
  %v365 = vadd.f32 %v317, %v349
  %v366 = vadd.f32 %v318, %v350
  %v367 = vadd.f32 %v319, %v351
  %v368 = vadd.f32 %v320, %v352
  %v369 = vadd.f32 %v321, %v353
  %v370 = vadd.f32 %v322, %v354
  %v371 = vadd.f32 %v323, %v355
  %v372 = vpack.c.bf16 %v356, %v356
  %v373 = vpack.c.bf16 %v357, %v357
  %v374 = vpack.c.bf16 %v358, %v358
  %v375 = vpack.c.bf16 %v359, %v359
  %v376 = vpack.c.bf16 %v360, %v360
  %v377 = vpack.c.bf16 %v361, %v361
  %v378 = vpack.c.bf16 %v362, %v362
  %v379 = vpack.c.bf16 %v363, %v363
  %v380 = vpack.c.bf16 %v364, %v364
  %v381 = vpack.c.bf16 %v365, %v365
  %v382 = vpack.c.bf16 %v366, %v366
  %v383 = vpack.c.bf16 %v367, %v367
  %v384 = vpack.c.bf16 %v368, %v368
  %v385 = vpack.c.bf16 %v369, %v369
  %v386 = vpack.c.bf16 %v370, %v370
  %v387 = vpack.c.bf16 %v371, %v371
  %388 = vst [vmem:[%s5] sm:$0xf] %v372
  %389 = vst [vmem:[%s5 + $0x4] sm:$0xf] %v373
  %390 = vst [vmem:[%s5 + $0x8] sm:$0xf] %v374
  %391 = vst [vmem:[%s5 + $0xc] sm:$0xf] %v375
  %392 = vst [vmem:[%s5 + $0x10] sm:$0xf] %v376
  %393 = vst [vmem:[%s5 + $0x14] sm:$0xf] %v377
  %394 = vst [vmem:[%s5 + $0x18] sm:$0xf] %v378
  %395 = vst [vmem:[%s5 + $0x1c] sm:$0xf] %v379
  %396 = vst [vmem:[%s5 + $0x20] sm:$0xf] %v380
  %397 = vst [vmem:[%s5 + $0x24] sm:$0xf] %v381
  %398 = vst [vmem:[%s5 + $0x28] sm:$0xf] %v382
  %399 = vst [vmem:[%s5 + $0x2c] sm:$0xf] %v383
  %400 = vst [vmem:[%s5 + $0x30] sm:$0xf] %v384
  %401 = vst [vmem:[%s5 + $0x34] sm:$0xf] %v385
  %402 = vst [vmem:[%s5 + $0x38] sm:$0xf] %v386
  %403 = vst [vmem:[%s5 + $0x3c] sm:$0xf] %v387
  // Predicated region
  $region22: #{encoder_block.7} parent=0 // pred_check
    _
  $region23: #{encoder_block.7} parent=0 // pred_check_branch
    %405 = sbr.rel (0) target = $region25
  $region24: #{encoder_block.7} parent=0 // pred_region
    _
  $region25: #{encoder_block.7} parent=0 // pred_fallthru
    _
  // Predicated region
  $region26: #{encoder_block.7} parent=0 // pred_check
    _
  $region27: #{encoder_block.7} parent=0 // pred_check_branch
    %407 = sbr.rel (0) target = $region29
  $region28: #{encoder_block.7} parent=0 // pred_region
    _
  $region29: #{encoder_block.7} parent=0 // pred_fallthru
    _

</llo_original>
